<compile_context>
chip_gen: v6e
topology: v6e:2x2x1
jax: 0.10.0
libtpu: 0.0.40
codegen_flags: <defaults>
</compile_context>

<pallas_src>
import functools

import jax
import jax.numpy as jnp
from jax.experimental import pallas as pl
from jax.experimental.pallas import tpu as pltpu

LANE = 128
DEFAULT_TM = 256     # dst-row tile (sublane axis of the adjacency tile)
DEFAULT_TK = 1024    # src-row tile (reduction axis; large -> fewer k steps)


def _round_up(x, m):
    return ((x + m - 1) // m) * m


def _pad_axis(x, target, axis):
    pad = target - x.shape[axis]
    if pad <= 0:
        return x
    widths = [(0, 0)] * x.ndim
    widths[axis] = (0, pad)
    return jnp.pad(x, widths)


# ----------------------------------------------------------------------------
# Kernel: one fused SAGEConv layer (mean aggregation + fused projection + bias
# [+ ReLU]) over a 2-D grid (dst tiles, src/reduction tiles).
# ----------------------------------------------------------------------------
def _sage_layer_kernel(adj_ref, deg_ref, hsrc_ref, hdst_ref, w_cat_ref, b_ref,
                       out_ref, acc_ref, lhs_ref, *, apply_relu, in_p):
    k = pl.program_id(1)

    @pl.when(k == 0)
    def _init():
        acc_ref[...] = jnp.zeros_like(acc_ref)
        # Stage the self-features into the first half of the fused-projection LHS
        # (constant across the k loop for a given dst tile).
        lhs_ref[:, pl.ds(0, in_p)] = hdst_ref[...]

    # Neighbor SUM over src tiles: acc += A_tile @ Hsrc_tile (bf16 in, f32 acc, MXU).
    acc_ref[...] += jnp.dot(adj_ref[...], hsrc_ref[...],
                            preferred_element_type=jnp.float32)

    @pl.when(k == pl.num_programs(1) - 1)
    def _finalize():
        # mean = sum / deg; approx reciprocal lives on the EUP slot (free vs MXU work).
        inv_deg = pl.reciprocal(jnp.maximum(deg_ref[...], 1.0), approx=True)   # (tm, 1)
        lhs_ref[:, pl.ds(in_p, in_p)] = (acc_ref[...] * inv_deg).astype(lhs_ref.dtype)
        # One fused MXU projection:  [h_dst | mean] @ [W_self ; W_neigh]  (K = 2*in_p).
        out = jnp.dot(lhs_ref[...], w_cat_ref[...],
                      preferred_element_type=jnp.float32) + b_ref[...]
        if apply_relu:
            out = jnp.maximum(out, 0.0)
        out_ref[...] = out.astype(out_ref.dtype)


def prepare_block(adj, deg, num_dst, *, tm=DEFAULT_TM, tk=DEFAULT_TK):
    """Pad + cast one DGL-style block ONCE (outside forward).

    adj: (num_dst, num_src) 0/1 adjacency, deg: (num_dst, 1) in-degrees.
    """
    num_rows, num_src = adj.shape
    assert num_rows >= num_dst

    tm = min(tm, _round_up(num_dst, 8))
    # Keep >= 2 dst tiles on large layers so both v7x TensorCores get work.
    if num_dst >= 256 and _round_up(num_dst, tm) // tm < 2:
        tm = _round_up(pl.cdiv(num_dst, 2), 8)
    tk = min(tk, _round_up(num_src, LANE))

    dst_p = _round_up(num_dst, tm)
    src_p = _round_up(num_src, tk)

    adj_p = _pad_axis(_pad_axis(adj[:num_dst].astype(jnp.bfloat16), dst_p, 0), src_p, 1)
    deg_p = _pad_axis(deg[:num_dst].astype(jnp.float32).reshape(num_dst, 1), dst_p, 0)
    return dict(adj=adj_p, deg=deg_p, num_dst=num_dst, num_src=num_src, tm=tm, tk=tk)


def sage_layer(block, h, w_cat, bias, *, apply_relu, out_dtype=jnp.bfloat16):
    """One fused SAGEConv layer on pre-padded operands. Returns padded (dst_p, out_p)."""
    adj_p, deg_p, tm, tk = block["adj"], block["deg"], block["tm"], block["tk"]
    dst_p, src_p = adj_p.shape
    rows, in_p = h.shape
    assert rows >= max(dst_p, src_p), (rows, dst_p, src_p)
    assert w_cat.shape[0] == 2 * in_p, (w_cat.shape, in_p)
    out_p = w_cat.shape[1]

    grid = (dst_p // tm, src_p // tk)
    out_itemsize = jnp.dtype(out_dtype).itemsize

    # VMEM footprint (double-buffered inputs/output + scratch) -> per-call limit, v7x-safe.
    vmem_est = (2 * (tm * tk * 2 + tm * 4 + tk * in_p * 2 + tm * in_p * 2
                     + 2 * in_p * out_p * 2 + out_p * 4 + tm * out_p * out_itemsize)
                + tm * in_p * 4 + tm * 2 * in_p * 2)
    vmem_limit = int(min(48 * 1024 * 1024, max(2 * vmem_est, 16 * 1024 * 1024)))

    flops = 2 * dst_p * src_p * in_p + 2 * dst_p * (2 * in_p) * out_p
    bytes_accessed = (adj_p.size * 2 + grid[0] * src_p * in_p * 2 + dst_p * in_p * 2
                      + deg_p.size * 4 + w_cat.size * 2 + bias.size * 4
                      + dst_p * out_p * out_itemsize)

    kernel = functools.partial(_sage_layer_kernel, apply_relu=apply_relu, in_p=in_p)

    return pl.pallas_call(
        kernel,
        out_shape=jax.ShapeDtypeStruct((dst_p, out_p), out_dtype),
        grid_spec=pltpu.PrefetchScalarGridSpec(
            num_scalar_prefetch=0,
            grid=grid,
            in_specs=[
                pl.BlockSpec((tm, tk), lambda i, k: (i, k)),           # adjacency (only per-k stream)
                pl.BlockSpec((tm, 1), lambda i, k: (i, 0)),            # in-degree column
                pl.BlockSpec((tk, in_p), lambda i, k: (k, 0)),         # src features (view of h)
                pl.BlockSpec((tm, in_p), lambda i, k: (i, 0)),         # dst features (same h array)
                pl.BlockSpec((2 * in_p, out_p), lambda i, k: (0, 0)),  # [W_self ; W_neigh] resident
                pl.BlockSpec((1, out_p), lambda i, k: (0, 0)),         # bias
            ],
            out_specs=pl.BlockSpec((tm, out_p), lambda i, k: (i, 0)),
            scratch_shapes=[
                pltpu.VMEM((tm, in_p), jnp.float32),       # A@H accumulator
                pltpu.VMEM((tm, 2 * in_p), jnp.bfloat16),  # fused [h_dst | mean] LHS
            ],
        ),
        compiler_params=pltpu.CompilerParams(
            dimension_semantics=("parallel", "arbitrary"),
            vmem_limit_bytes=vmem_limit,
        ),
        cost_estimate=pl.CostEstimate(flops=int(flops), transcendentals=int(dst_p),
                                      bytes_accessed=int(bytes_accessed)),
    )(adj_p, deg_p, h, h, w_cat, bias)


class DistSAGEPallas:
    """JAX/Pallas equivalent of DistSAGE.forward (inference mode: dropout == identity)."""

    def __init__(self, in_channels, hidden_channels, out_channels, num_layers, dropout, key):
        assert num_layers >= 2
        self.num_layers = num_layers
        self.dropout = dropout  # TODO(synk): training-mode dropout would use pltpu.prng_*; eval mode is identity.
        self.out_channels = out_channels
        dims = [in_channels] + [hidden_channels] * (num_layers - 1) + [out_channels]
        # Lane-dense feature padding (out_p of layer l == in_p of layer l+1 by construction).
        self.in_ps = [_round_up(dims[l], LANE) for l in range(num_layers)]
        self.out_ps = [_round_up(dims[l + 1], LANE) for l in range(num_layers)]

        self.raw_params = []     # unpadded bf16 weights (used by the plain-JAX reference)
        self.padded_params = []  # ([W_self ; W_neigh] padded bf16, bias padded f32), built ONCE
        for l in range(num_layers):
            fan_in, fan_out = dims[l], dims[l + 1]
            key, k1, k2, k3 = jax.random.split(key, 4)
            scale = 1.0 / float(fan_in) ** 0.5
            w_self = jax.random.uniform(k1, (fan_in, fan_out), jnp.float32, -scale, scale).astype(jnp.bfloat16)
            w_neigh = jax.random.uniform(k2, (fan_in, fan_out), jnp.float32, -scale, scale).astype(jnp.bfloat16)
            bias = jax.random.uniform(k3, (1, fan_out), jnp.float32, -scale, scale)
            self.raw_params.append((w_self, w_neigh, bias))

            in_p, out_p = self.in_ps[l], self.out_ps[l]
            ws_p = _pad_axis(_pad_axis(w_self, in_p, 0), out_p, 1)
            wn_p = _pad_axis(_pad_axis(w_neigh, in_p, 0), out_p, 1)
            w_cat = jnp.concatenate([ws_p, wn_p], axis=0)          # (2*in_p, out_p), K-stacked
            bias_p = _pad_axis(bias, out_p, 1)                     # (1, out_p) f32
            self.padded_params.append((w_cat, bias_p))

    def forward(self, blocks, x):
        # Eval-mode forward: F.dropout(..., training=False) is the identity.
        h = _pad_axis(x.astype(jnp.bfloat16), self.in_ps[0], 1)   # lane-dense bf16 activations
        for l, (blk, (w_cat, bias_p)) in enumerate(zip(blocks, self.padded_params)):
            need_rows = max(blk["adj"].shape[0], blk["adj"].shape[1])
            if h.shape[0] < need_rows:                             # cheap defensive zero-row pad
                h = _pad_axis(h, need_rows, 0)
            last = l == self.num_layers - 1
            h = sage_layer(blk, h, w_cat, bias_p, apply_relu=not last,
                           out_dtype=jnp.float32 if last else jnp.bfloat16)
        return h[:blocks[-1]["num_dst"], :self.out_channels]


def _reference_forward(model, raw_blocks, x):
    """Plain-JAX reference with the same bf16 storage boundaries, f32 accumulation."""
    h = x.astype(jnp.bfloat16).astype(jnp.float32)
    for l, ((adj, deg, num_dst), (w_self, w_neigh, bias)) in enumerate(zip(raw_blocks, model.raw_params)):
        a = adj.astype(jnp.float32)
        agg = a @ h
        mean = agg / jnp.maximum(deg, 1.0)
        mean = mean.astype(jnp.bfloat16).astype(jnp.float32)     # kernel stages the mean in bf16
        out = (h[:num_dst] @ w_self.astype(jnp.float32)
               + mean @ w_neigh.astype(jnp.float32) + bias)
        if l != model.num_layers - 1:
            out = jnp.maximum(out, 0.0)
            h = out.astype(jnp.bfloat16).astype(jnp.float32)
        else:
            h = out
    return h


if __name__ == "__main__":
    key = jax.random.PRNGKey(0)

    in_channels, hidden_channels, out_channels = 64, 128, 48
    num_layers, dropout = 2, 0.5

    # Synthetic mini-batch blocks (bipartite MFGs): layer 0: 512 src -> 256 dst,
    # layer 1: 256 src -> 128 dst (DGL convention: dst nodes are the first src nodes).
    key, kx, ka0, ka1, kw = jax.random.split(key, 5)
    x = jax.random.normal(kx, (512, in_channels), jnp.float32)

    def make_block(k, num_dst, num_src, density=0.3):
        adj = (jax.random.uniform(k, (num_dst, num_src)) < density).astype(jnp.float32)
        idx = jnp.arange(num_dst)
        adj = adj.at[idx, idx].set(1.0)            # keep the self edge -> no zero in-degree
        deg = jnp.sum(adj, axis=1, keepdims=True)  # exact f32 counts
        return adj.astype(jnp.bfloat16), deg, num_dst   # 0/1 adjacency is exact in bf16

    raw_blocks = [make_block(ka0, 256, 512), make_block(ka1, 128, 256)]
    # Pad + cast the adjacency/degree ONCE, outside forward (no per-call copy of adj).
    blocks = [prepare_block(adj, deg, num_dst) for adj, deg, num_dst in raw_blocks]

    model = DistSAGEPallas(in_channels, hidden_channels, out_channels, num_layers, dropout, kw)

    out = jax.block_until_ready(model.forward(blocks, x))
    ref = _reference_forward(model, raw_blocks, x)

    assert out.shape == (128, out_channels)
    assert jnp.allclose(out, ref, rtol=1e-2, atol=1e-2), (
        f"Pallas output mismatch vs reference; max abs diff = {jnp.max(jnp.abs(out - ref))}")

    print("KERNEL_OK")
</pallas_src>

<mosaic_0001>
module attributes {stable_mosaic.version = 11 : i64} {
  func.func @_sage_layer_kernel(%arg0: i32, %arg1: i32, %arg2: memref<128x512xbf16, #tpu.memory_space<vmem>>, %arg3: memref<128x1xf32, #tpu.memory_space<vmem>>, %arg4: memref<512x128xbf16, #tpu.memory_space<vmem>>, %arg5: memref<128x128xbf16, #tpu.memory_space<vmem>>, %arg6: memref<256x128xbf16, #tpu.memory_space<vmem>>, %arg7: memref<1x128xf32, #tpu.memory_space<vmem>>, %arg8: memref<128x128xbf16, #tpu.memory_space<vmem>>, %arg9: memref<128x128xf32, #tpu.memory_space<vmem>>, %arg10: memref<128x256xbf16, #tpu.memory_space<vmem>>) attributes {dimension_semantics = [#tpu.dimension_semantics<parallel>, #tpu.dimension_semantics<arbitrary>], iteration_bounds = array<i64: 2, 1>, scalar_prefetch = 0 : i64, scratch_operands = 2 : i64, tpu.core_type = #tpu.core_type<tc>, window_params = [{transform_indices = @transform_0, window_bounds = array<i64: 128, 512>}, {transform_indices = @transform_1, window_bounds = array<i64: 128, 1>}, {transform_indices = @transform_2, window_bounds = array<i64: 512, 128>}, {transform_indices = @transform_3, window_bounds = array<i64: 128, 128>}, {pipeline_mode = #tpu.pipeline_mode<synchronous>, transform_indices = @transform_4, window_bounds = array<i64: 256, 128>}, {pipeline_mode = #tpu.pipeline_mode<synchronous>, transform_indices = @transform_5, window_bounds = array<i64: 1, 128>}, {transform_indices = @transform_6, window_bounds = array<i64: 128, 128>}]} {
    %c0_i32 = arith.constant 0 : i32
    %0 = arith.cmpi eq, %arg1, %c0_i32 : i32
    %1 = arith.extui %0 : i1 to i32
    %c0_i32_0 = arith.constant 0 : i32
    %2 = arith.cmpi ne, %1, %c0_i32_0 : i32
    scf.if %2 {
      %cst_10 = arith.constant 0.000000e+00 : f32
      %12 = vector.broadcast %cst_10 : f32 to vector<128x128xf32>
      %c0_11 = arith.constant 0 : index
      %c0_12 = arith.constant 0 : index
      %13 = vector.load %arg9[%c0_11, %c0_12] : memref<128x128xf32, #tpu.memory_space<vmem>>, vector<128x128xf32>
      tpu.vector_store %arg9[%c0_11, %c0_12], %12 {strides = array<i32>} : memref<128x128xf32, #tpu.memory_space<vmem>>, vector<128x128xf32>,
      %c0_13 = arith.constant 0 : index
      %c0_14 = arith.constant 0 : index
      %14 = vector.load %arg5[%c0_13, %c0_14] : memref<128x128xbf16, #tpu.memory_space<vmem>>, vector<128x128xbf16>
      %c0_15 = arith.constant 0 : index
      %c0_16 = arith.constant 0 : index
      %15 = vector.load %arg10[%c0_15, %c0_16] : memref<128x256xbf16, #tpu.memory_space<vmem>>, vector<128x128xbf16>
      tpu.vector_store %arg10[%c0_15, %c0_16], %14 {strides = array<i32>} : memref<128x256xbf16, #tpu.memory_space<vmem>>, vector<128x128xbf16>,
    } else {
    }
    %c0 = arith.constant 0 : index
    %c0_1 = arith.constant 0 : index
    %3 = vector.load %arg9[%c0, %c0_1] : memref<128x128xf32, #tpu.memory_space<vmem>>, vector<128x128xf32>
    %c0_2 = arith.constant 0 : index
    %c0_3 = arith.constant 0 : index
    %4 = vector.load %arg2[%c0_2, %c0_3] : memref<128x512xbf16, #tpu.memory_space<vmem>>, vector<128x512xbf16>
    %c0_4 = arith.constant 0 : index
    %c0_5 = arith.constant 0 : index
    %5 = vector.load %arg4[%c0_4, %c0_5] : memref<512x128xbf16, #tpu.memory_space<vmem>>, vector<512x128xbf16>
    %cst = arith.constant dense<0.000000e+00> : vector<128x128xf32>
    %6 = tpu.matmul %4, %5, %cst {dimension_numbers = #tpu.dot_dimension_numbers<[1], [0], [0], [1], [0, 0, 1, 1], [], []>} : vector<128x512xbf16>, vector<512x128xbf16>, vector<128x128xf32> -> vector<128x128xf32>
    %7 = arith.addf %3, %6 : vector<128x128xf32>
    %c0_6 = arith.constant 0 : index
    %c0_7 = arith.constant 0 : index
    %8 = vector.load %arg9[%c0_6, %c0_7] : memref<128x128xf32, #tpu.memory_space<vmem>>, vector<128x128xf32>
    tpu.vector_store %arg9[%c0_6, %c0_7], %7 {strides = array<i32>} : memref<128x128xf32, #tpu.memory_space<vmem>>, vector<128x128xf32>,
    %c0_i32_8 = arith.constant 0 : i32
    %9 = arith.cmpi eq, %arg1, %c0_i32_8 : i32
    %10 = arith.extui %9 : i1 to i32
    %c0_i32_9 = arith.constant 0 : i32
    %11 = arith.cmpi ne, %10, %c0_i32_9 : i32
    scf.if %11 {
      %c0_10 = arith.constant 0 : index
      %c0_11 = arith.constant 0 : index
      %12 = vector.load %arg3[%c0_10, %c0_11] : memref<128x1xf32, #tpu.memory_space<vmem>>, vector<128x1xf32>
      %cst_12 = arith.constant 1.000000e+00 : f32
      %13 = vector.broadcast %cst_12 : f32 to vector<128x1xf32>
      %14 = arith.maximumf %12, %13 : vector<128x1xf32>
      %15 = tpu.reciprocal %14 {approx = true} : vector<128x1xf32> -> vector<128x1xf32>
      %c0_13 = arith.constant 0 : index
      %c0_14 = arith.constant 0 : index
      %16 = vector.load %arg9[%c0_13, %c0_14] : memref<128x128xf32, #tpu.memory_space<vmem>>, vector<128x128xf32>
      %17 = vector.broadcast %15 : vector<128x1xf32> to vector<128x128xf32>
      %18 = arith.mulf %16, %17 : vector<128x128xf32>
      %19 = arith.truncf %18 : vector<128x128xf32> to vector<128x128xbf16>
      %c0_15 = arith.constant 0 : index
      %c128 = arith.constant 128 : index
      %20 = vector.load %arg10[%c0_15, %c128] : memref<128x256xbf16, #tpu.memory_space<vmem>>, vector<128x128xbf16>
      tpu.vector_store %arg10[%c0_15, %c128], %19 {strides = array<i32>} : memref<128x256xbf16, #tpu.memory_space<vmem>>, vector<128x128xbf16>,
      %c0_16 = arith.constant 0 : index
      %c0_17 = arith.constant 0 : index
      %21 = vector.load %arg10[%c0_16, %c0_17] : memref<128x256xbf16, #tpu.memory_space<vmem>>, vector<128x256xbf16>
      %c0_18 = arith.constant 0 : index
      %c0_19 = arith.constant 0 : index
      %22 = vector.load %arg6[%c0_18, %c0_19] : memref<256x128xbf16, #tpu.memory_space<vmem>>, vector<256x128xbf16>
      %cst_20 = arith.constant dense<0.000000e+00> : vector<128x128xf32>
      %23 = tpu.matmul %21, %22, %cst_20 {dimension_numbers = #tpu.dot_dimension_numbers<[1], [0], [0], [1], [0, 0, 1, 1], [], []>} : vector<128x256xbf16>, vector<256x128xbf16>, vector<128x128xf32> -> vector<128x128xf32>
      %c0_21 = arith.constant 0 : index
      %c0_22 = arith.constant 0 : index
      %24 = vector.load %arg7[%c0_21, %c0_22] : memref<1x128xf32, #tpu.memory_space<vmem>>, vector<1x128xf32>
      %25 = vector.broadcast %24 : vector<1x128xf32> to vector<128x128xf32>
      %26 = arith.addf %23, %25 : vector<128x128xf32>
      %cst_23 = arith.constant 0.000000e+00 : f32
      %27 = vector.broadcast %cst_23 : f32 to vector<128x128xf32>
      %28 = arith.maximumf %26, %27 : vector<128x128xf32>
      %29 = arith.truncf %28 : vector<128x128xf32> to vector<128x128xbf16>
      %c0_24 = arith.constant 0 : index
      %c0_25 = arith.constant 0 : index
      %30 = vector.load %arg8[%c0_24, %c0_25] : memref<128x128xbf16, #tpu.memory_space<vmem>>, vector<128x128xbf16>
      tpu.vector_store %arg8[%c0_24, %c0_25], %29 {strides = array<i32>} : memref<128x128xbf16, #tpu.memory_space<vmem>>, vector<128x128xbf16>,
    } else {
    }
    return
  }
  func.func @transform_0(%arg0: i32, %arg1: i32) -> (i32, i32) {
    %c0_i32 = arith.constant 0 : i32
    return %arg0, %arg1 : i32, i32
  }
  func.func @transform_1(%arg0: i32, %arg1: i32) -> (i32, i32) {
    %c0_i32 = arith.constant 0 : i32
    %c0_i32_0 = arith.constant 0 : i32
    return %arg0, %c0_i32 : i32, i32
  }
  func.func @transform_2(%arg0: i32, %arg1: i32) -> (i32, i32) {
    %c0_i32 = arith.constant 0 : i32
    %c0_i32_0 = arith.constant 0 : i32
    return %arg1, %c0_i32 : i32, i32
  }
  func.func @transform_3(%arg0: i32, %arg1: i32) -> (i32, i32) {
    %c0_i32 = arith.constant 0 : i32
    %c0_i32_0 = arith.constant 0 : i32
    return %arg0, %c0_i32 : i32, i32
  }
  func.func @transform_4(%arg0: i32, %arg1: i32) -> (i32, i32) {
    %c0_i32 = arith.constant 0 : i32
    %c0_i32_0 = arith.constant 0 : i32
    %c0_i32_1 = arith.constant 0 : i32
    return %c0_i32, %c0_i32_0 : i32, i32
  }
  func.func @transform_5(%arg0: i32, %arg1: i32) -> (i32, i32) {
    %c0_i32 = arith.constant 0 : i32
    %c0_i32_0 = arith.constant 0 : i32
    %c0_i32_1 = arith.constant 0 : i32
    return %c0_i32, %c0_i32_0 : i32, i32
  }
  func.func @transform_6(%arg0: i32, %arg1: i32) -> (i32, i32) {
    %c0_i32 = arith.constant 0 : i32
    %c0_i32_0 = arith.constant 0 : i32
    return %arg0, %c0_i32 : i32, i32
  }
}

</mosaic_0001>

<llo_original>
// kernel: tpu_custom_call.1
$region0: #{tpu_custom_call.1}
  #allocation0 [shape = 'u32[]', space=smem, size = 0x4, offset = 0x4, fixed_abs, tag = 'smem constant byte address 0x4 - core index']
  #allocation1 [shape = 'u32[144,128]{1,0:T(1,128)}', space=vmem, size = 0x12000, scoped, tag = 'internal scratch']
  #allocation2 [shape = 'f32[128,128]{1,0:T(8,128)}', space=vmem, size = 0x10000, scoped, tag = 'scratch operand']
  #allocation3 [shape = 'bf16[128,256]{1,0:T(8,128)(2,1)}', space=vmem, size = 0x10000, scoped, tag = 'scratch operand']
  %s0 = inlined_call_operand.hbm [shape: bf16[256,512], index: 0, kind: input, shape index: {}]
  %s1 = inlined_call_operand.vmem [shape: f32[256,1], index: 1, kind: input, shape index: {}]
  %s2 = inlined_call_operand.vmem [shape: bf16[512,128], index: 2, kind: input, shape index: {}]
  %s3 = inlined_call_operand.hbm [shape: bf16[512,128], index: 3, kind: input, shape index: {}]
  %s4 = inlined_call_operand.hbm [shape: bf16[256,128], index: 4, kind: input, shape index: {}]
  %s5 = inlined_call_operand.vmem [shape: f32[1,128], index: 5, kind: input, shape index: {}]
  %s6 = inlined_call_operand.hbm [shape: bf16[256,128], index: 6, kind: output, shape index: {}]
  %s7 = sld [smem:[#allocation0]]
  $region77: #{tpu_custom_call.1} parent=0
    _
  %s9 = ssub.s32 1, %s7
  %s10 = scalar_select 0, %s9, %s7
  $region1: #{tpu_custom_call.1} parent=0
    #allocation4 [shape = 'u8[262144]{0}', space=vmem, size = 0x40000, scoped, tag = 'input window, operand 0']
    #allocation5 [shape = 's32[2]{0}', space=sflag, size = 0x8, scoped, tag = 'scoped memory for tpu_custom_call.1']
    #allocation6 [shape = 's32[2]{0}', space=sflag, size = 0x8, scoped, tag = 'scoped memory for tpu_custom_call.1']
    #allocation7 [shape = 'u8[65536]{0}', space=vmem, size = 0x10000, scoped, tag = 'input window, operand 3']
    #allocation8 [shape = 's32[2]{0}', space=sflag, size = 0x8, scoped, tag = 'scoped memory for tpu_custom_call.1']
    #allocation9 [shape = 'u8[65536]{0}', space=vmem, size = 0x10000, scoped, tag = 'input window, operand 4, single buffered']
    #allocation10 [shape = 'u8[65536]{0}', space=vmem, size = 0x10000, scoped, tag = 'output window, operand 0']
    %11 = vsyncpa [#allocation5], 0
    %s12 = scalar_lea.sflag [#allocation5], 1
    %13 = vsyncpa %s12, 0
    %14 = vsyncpa [#allocation8], 0
    %s15 = scalar_lea.sflag [#allocation8], 1
    %16 = vsyncpa %s15, 0
    %17 = vsyncpa [#allocation6], 0
    %s18 = scalar_lea.sflag [#allocation6], 1
    %19 = vsyncpa %s18, 0
    loop: start=0, step=1, limit=4
    $region2: #{tpu_custom_call.1} parent=1 // loop_pre_header
      _
    $region3: #{tpu_custom_call.1} parent=1 // loop_header
      %s21 = sphi 0, %s25
      %p22 = scmp.ge.s32.totalorder %s21, 4
      %s28 = sphi 0, %s40
      %s29 = sphi 0, %s36
      %s30 = sphi 0, %s28
      %s31 = sphi 0, %s29
      %s32 = sphi 0, %s30
      %s33 = sphi 0, %s31
      %s45 = sphi 0, %s47
      %s48 = sphi 0, %s45
      %s49 = sphi 0, %s48
      %s65 = sphi 0, %s49
      %s71 = sphi 0, %s73
      %s74 = sphi 0, %s71
      %s75 = sphi 0, %s74
      %s91 = sphi 0, %s75
      %s97 = sphi 0, %s99
      %s100 = sphi 0, %s97
      %s101 = sphi 0, %s100
      %s117 = sphi 0, %s101
      %s123 = sphi 0, %s125
      %s126 = sphi 0, %s123
      %s127 = sphi 0, %s126
      %s143 = sphi 0, %s127
      %s147 = sphi 0, %s147
      %s149 = sphi 0, %s147
      %s150 = sphi 0, %s149
      %s164 = sphi 0, %s150
      %s168 = sphi 0, %s168
      %s170 = sphi 0, %s168
      %s171 = sphi 0, %s170
      %s185 = sphi 0, %s171
      %s191 = sphi 0, %s193
      %s194 = sphi 0, %s191
      %s195 = sphi 0, %s194
      %s211 = sphi 0, %s195
    $region4: #{tpu_custom_call.1} parent=1 // loop_header_branch
      %24 = sbr.rel (%p22) target = $region8
    $region5: #{tpu_custom_call.1} parent=1 // loop_body
      %s26 = ssub.s32 %s21, 1
      %s27 = ssub.s32 %s21, 2
      %s34 = sadd.s32 1, %s29
      %p35 = scmp.ge.s32.totalorder %s34, 1
      %s36 = scalar_select %p35, 0, %s34
      %s37 = sadd.s32 1, %s28
      %s38 = scalar_select %p35, %s37, %s28
      %p39 = scmp.ge.s32.totalorder %s38, 2
      %s40 = scalar_select %p39, 0, %s38
      %s41 = ssub.s32 %s28, %s40
      %s42 = ssub.s32 %s29, %s36
      %s43 = sor.u32 %s41, %s42
      %p44 = scmp.eq.s32.totalorder %s43, 0
      %s46 = sadd.s32 %s45, 1
      %s47 = scalar_select %p44, %s45, %s46
      %p50 = pneg %p44
      %p51 = scmp.eq.s32.totalorder %s21, 1
      %p52 = por %p50, %p51
      %p53 = scmp.ne.s32.totalorder %s45, %s48
      %p54 = scmp.eq.s32.totalorder %s21, 0
      %p55 = por %p53, %p54
      %p56 = scmp.ne.s32.totalorder %s45, %s48
      %p57 = scmp.eq.s32.totalorder %s26, 1
      %p58 = por %p56, %p57
      %p59 = scmp.ne.s32.totalorder %s48, %s49
      %p60 = scmp.eq.s32.totalorder %s26, 0
      %p61 = por %p59, %p60
      %p62 = scmp.ne.s32.totalorder %s48, %s49
      %p63 = scmp.eq.s32.totalorder %s27, 1
      %p64 = por %p62, %p63
      %p66 = scmp.ne.s32.totalorder %s49, %s65
      %p67 = scmp.eq.s32.totalorder %s27, 0
      %p68 = por %p66, %p67
      %s69 = ssub.s32 %s28, %s40
      %p70 = scmp.eq.s32.totalorder %s69, 0
      %s72 = sadd.s32 %s71, 1
      %s73 = scalar_select %p70, %s71, %s72
      %p76 = pneg %p70
      %p77 = scmp.eq.s32.totalorder %s21, 1
      %p78 = por %p76, %p77
      %p79 = scmp.ne.s32.totalorder %s71, %s74
      %p80 = scmp.eq.s32.totalorder %s21, 0
      %p81 = por %p79, %p80
      %p82 = scmp.ne.s32.totalorder %s71, %s74
      %p83 = scmp.eq.s32.totalorder %s26, 1
      %p84 = por %p82, %p83
      %p85 = scmp.ne.s32.totalorder %s74, %s75
      %p86 = scmp.eq.s32.totalorder %s26, 0
      %p87 = por %p85, %p86
      %p88 = scmp.ne.s32.totalorder %s74, %s75
      %p89 = scmp.eq.s32.totalorder %s27, 1
      %p90 = por %p88, %p89
      %p92 = scmp.ne.s32.totalorder %s75, %s91
      %p93 = scmp.eq.s32.totalorder %s27, 0
      %p94 = por %p92, %p93
      %s95 = ssub.s32 %s29, %s36
      %p96 = scmp.eq.s32.totalorder %s95, 0
      %s98 = sadd.s32 %s97, 1
      %s99 = scalar_select %p96, %s97, %s98
      %p102 = pneg %p96
      %p103 = scmp.eq.s32.totalorder %s21, 1
      %p104 = por %p102, %p103
      %p105 = scmp.ne.s32.totalorder %s97, %s100
      %p106 = scmp.eq.s32.totalorder %s21, 0
      %p107 = por %p105, %p106
      %p108 = scmp.ne.s32.totalorder %s97, %s100
      %p109 = scmp.eq.s32.totalorder %s26, 1
      %p110 = por %p108, %p109
      %p111 = scmp.ne.s32.totalorder %s100, %s101
      %p112 = scmp.eq.s32.totalorder %s26, 0
      %p113 = por %p111, %p112
      %p114 = scmp.ne.s32.totalorder %s100, %s101
      %p115 = scmp.eq.s32.totalorder %s27, 1
      %p116 = por %p114, %p115
      %p118 = scmp.ne.s32.totalorder %s101, %s117
      %p119 = scmp.eq.s32.totalorder %s27, 0
      %p120 = por %p118, %p119
      %s121 = ssub.s32 %s28, %s40
      %p122 = scmp.eq.s32.totalorder %s121, 0
      %s124 = sadd.s32 %s123, 1
      %s125 = scalar_select %p122, %s123, %s124
      %p128 = pneg %p122
      %p129 = scmp.eq.s32.totalorder %s21, 1
      %p130 = por %p128, %p129
      %p131 = scmp.ne.s32.totalorder %s123, %s126
      %p132 = scmp.eq.s32.totalorder %s21, 0
      %p133 = por %p131, %p132
      %p134 = scmp.ne.s32.totalorder %s123, %s126
      %p135 = scmp.eq.s32.totalorder %s26, 1
      %p136 = por %p134, %p135
      %p137 = scmp.ne.s32.totalorder %s126, %s127
      %p138 = scmp.eq.s32.totalorder %s26, 0
      %p139 = por %p137, %p138
      %p140 = scmp.ne.s32.totalorder %s126, %s127
      %p141 = scmp.eq.s32.totalorder %s27, 1
      %p142 = por %p140, %p141
      %p144 = scmp.ne.s32.totalorder %s127, %s143
      %p145 = scmp.eq.s32.totalorder %s27, 0
      %p146 = por %p144, %p145
      %s148 = sadd.s32 %s147, 1
      %p151 = scmp.eq.s32.totalorder %s21, 1
      %p152 = scmp.ne.s32.totalorder %s147, %s149
      %p153 = scmp.eq.s32.totalorder %s21, 0
      %p154 = por %p152, %p153
      %p155 = scmp.ne.s32.totalorder %s147, %s149
      %p156 = scmp.eq.s32.totalorder %s26, 1
      %p157 = por %p155, %p156
      %p158 = scmp.ne.s32.totalorder %s149, %s150
      %p159 = scmp.eq.s32.totalorder %s26, 0
      %p160 = por %p158, %p159
      %p161 = scmp.ne.s32.totalorder %s149, %s150
      %p162 = scmp.eq.s32.totalorder %s27, 1
      %p163 = por %p161, %p162
      %p165 = scmp.ne.s32.totalorder %s150, %s164
      %p166 = scmp.eq.s32.totalorder %s27, 0
      %p167 = por %p165, %p166
      %s169 = sadd.s32 %s168, 1
      %p172 = scmp.eq.s32.totalorder %s21, 1
      %p173 = scmp.ne.s32.totalorder %s168, %s170
      %p174 = scmp.eq.s32.totalorder %s21, 0
      %p175 = por %p173, %p174
      %p176 = scmp.ne.s32.totalorder %s168, %s170
      %p177 = scmp.eq.s32.totalorder %s26, 1
      %p178 = por %p176, %p177
      %p179 = scmp.ne.s32.totalorder %s170, %s171
      %p180 = scmp.eq.s32.totalorder %s26, 0
      %p181 = por %p179, %p180
      %p182 = scmp.ne.s32.totalorder %s170, %s171
      %p183 = scmp.eq.s32.totalorder %s27, 1
      %p184 = por %p182, %p183
      %p186 = scmp.ne.s32.totalorder %s171, %s185
      %p187 = scmp.eq.s32.totalorder %s27, 0
      %p188 = por %p186, %p187
      %s189 = ssub.s32 %s28, %s40
      %p190 = scmp.eq.s32.totalorder %s189, 0
      %s192 = sadd.s32 %s191, 1
      %s193 = scalar_select %p190, %s191, %s192
      %p196 = pneg %p190
      %p197 = scmp.eq.s32.totalorder %s21, 1
      %p198 = por %p196, %p197
      %p199 = scmp.ne.s32.totalorder %s191, %s194
      %p200 = scmp.eq.s32.totalorder %s21, 0
      %p201 = por %p199, %p200
      %p202 = scmp.ne.s32.totalorder %s191, %s194
      %p203 = scmp.eq.s32.totalorder %s26, 1
      %p204 = por %p202, %p203
      %p205 = scmp.ne.s32.totalorder %s194, %s195
      %p206 = scmp.eq.s32.totalorder %s26, 0
      %p207 = por %p205, %p206
      %p208 = scmp.ne.s32.totalorder %s194, %s195
      %p209 = scmp.eq.s32.totalorder %s27, 1
      %p210 = por %p208, %p209
      %p212 = scmp.ne.s32.totalorder %s195, %s211
      %p213 = scmp.eq.s32.totalorder %s27, 0
      %p214 = por %p212, %p213
      %p215 = scmp.le.s32.totalorder 1, %s21
      %p216 = scmp.lt.s32.totalorder %s21, 3
      %p217 = pnand %p215, %p216
      %p218 = pneg %p217
      // Predicated region
      $region9: #{tpu_custom_call.1} parent=5 // pred_check
        _
      $region10: #{tpu_custom_call.1} parent=5 // pred_check_branch
        %220 = sbr.rel (%p217) target = $region12
      $region11: #{tpu_custom_call.1} parent=5 // pred_region
        %s221 = ssub.s32 %s21, 1
        // Predicated region
        $region13: #{tpu_custom_call.1} parent=11 // pred_check
          %p222 = pneg %p113
        $region14: #{tpu_custom_call.1} parent=11 // pred_check_branch
          %224 = sbr.rel (%p222) target = $region16
        $region15: #{tpu_custom_call.1} parent=11 // pred_region
          %s225 = smul.u32 64, %s31
          %p226 = scmp.lt.s32.totalorder %s225, 63
          %s227 = scalar_select %p226, %s225, 63
          %s228 = smul.addr %s227, 4
          %s229 = scalar_lea.vmem %s2, %s228
          %s230 = smul.u32 64, %s31
        $region16: #{tpu_custom_call.1} parent=11 // pred_fallthru
          _
        // Predicated region
        $region17: #{tpu_custom_call.1} parent=11 // pred_check
          %p231 = pneg %p160
        $region18: #{tpu_custom_call.1} parent=11 // pred_check_branch
          %233 = sbr.rel (%p231) target = $region20
        $region19: #{tpu_custom_call.1} parent=11 // pred_region
          %s235 = ssub.s32 2048, 2048
          %236 = vsyncadd [#allocation8], %s235
          %s237 = sshll.u32 [#allocation9], 4
          %s238 = int_to_ptr.vmem [resolvable:$true] %s237
          %243 = dma.hbm_to_vmem [thread:$0]  %s4, 2048, %s238, [#allocation8], 64, 64, 4
        $region20: #{tpu_custom_call.1} parent=11 // pred_fallthru
          _
        // Predicated region
        $region21: #{tpu_custom_call.1} parent=11 // pred_check
          %p244 = pneg %p181
        $region22: #{tpu_custom_call.1} parent=11 // pred_check_branch
          %246 = sbr.rel (%p244) target = $region24
        $region23: #{tpu_custom_call.1} parent=11 // pred_region
          _
        $region24: #{tpu_custom_call.1} parent=11 // pred_fallthru
          _
      $region12: #{tpu_custom_call.1} parent=5 // pred_fallthru
        _
      %p247 = scmp.lt.s32.totalorder %s21, 2
      // Predicated region
      $region25: #{tpu_custom_call.1} parent=5 // pred_check
        %p248 = pneg %p247
      $region26: #{tpu_custom_call.1} parent=5 // pred_check_branch
        %250 = sbr.rel (%p248) target = $region28
      $region27: #{tpu_custom_call.1} parent=5 // pred_region
        // Predicated region
        $region29: #{tpu_custom_call.1} parent=27 // pred_check
          %p251 = pneg %p55
        $region30: #{tpu_custom_call.1} parent=27 // pred_check_branch
          %253 = sbr.rel (%p251) target = $region32
        $region31: #{tpu_custom_call.1} parent=27 // pred_region
          %s254 = sand.u32 %s45, 1
          %s255 = scalar_lea.sflag [#allocation5], %s254
          %s256 = sand.u32 %s45, 1
          %s257 = smul.addr %s256, 256
          %s258 = scalar_lea.vmem [#allocation4], %s257
          %s259 = smul.u32 16, %s28
          %s260 = smul.u32 4, %s29
          %s262 = ssub.s32 4096, 4096
          %263 = vsyncadd %s255, %s262
          %s264 = smul.addr %s259, 4
          %s265 = sadd.s32 %s260, %s264
          %s266 = smul.addr %s265, 64
          %s267 = scalar_lea.hbm %s0, %s266
          %s268 = sshll.u32 %s258, 4
          %s269 = int_to_ptr.vmem [resolvable:$true] %s268
          %274 = dma.hbm_to_vmem [thread:$0]  %s267, 4096, %s269, %s255, 256, 256, 16
        $region32: #{tpu_custom_call.1} parent=27 // pred_fallthru
          _
        // Predicated region
        $region33: #{tpu_custom_call.1} parent=27 // pred_check
          %p275 = pneg %p81
        $region34: #{tpu_custom_call.1} parent=27 // pred_check_branch
          %277 = sbr.rel (%p275) target = $region36
        $region35: #{tpu_custom_call.1} parent=27 // pred_region
          %s278 = smul.u32 16, %s28
          %p279 = scmp.lt.s32.totalorder %s278, 31
          %s280 = scalar_select %p279, %s278, 31
          %s281 = smul.addr %s280, 8
          %s282 = scalar_lea.vmem %s1, %s281
          %s283 = smul.u32 16, %s28
        $region36: #{tpu_custom_call.1} parent=27 // pred_fallthru
          _
        // Predicated region
        $region37: #{tpu_custom_call.1} parent=27 // pred_check
          %p284 = pneg %p133
        $region38: #{tpu_custom_call.1} parent=27 // pred_check_branch
          %286 = sbr.rel (%p284) target = $region40
        $region39: #{tpu_custom_call.1} parent=27 // pred_region
          %s287 = sand.u32 %s21, 1
          %s288 = scalar_lea.sflag [#allocation8], %s287
          %s289 = sand.u32 %s123, 1
          %s290 = smul.addr %s289, 64
          %s291 = scalar_lea.vmem [#allocation7], %s290
          %s292 = smul.u32 16, %s28
          %s294 = ssub.s32 1024, 1024
          %295 = vsyncadd %s288, %s294
          %s296 = smul.addr %s292, 64
          %s297 = scalar_lea.hbm %s3, %s296
          %s298 = sshll.u32 %s291, 4
          %s299 = int_to_ptr.vmem [resolvable:$true] %s298
          %304 = dma.hbm_to_vmem [thread:$0]  %s297, 1024, %s299, %s288, 64, 64, 4
        $region40: #{tpu_custom_call.1} parent=27 // pred_fallthru
          _
      $region28: #{tpu_custom_call.1} parent=5 // pred_fallthru
        _
      %p305 = scmp.le.s32.totalorder 1, %s21
      %p306 = scmp.lt.s32.totalorder %s21, 3
      %p307 = pnand %p305, %p306
      %p308 = pneg %p307
      // Predicated region
      $region41: #{tpu_custom_call.1} parent=5 // pred_check
        _
      $region42: #{tpu_custom_call.1} parent=5 // pred_check_branch
        %310 = sbr.rel (%p307) target = $region44
      $region43: #{tpu_custom_call.1} parent=5 // pred_region
        %s311 = ssub.s32 %s21, 1
        %s312 = sand.u32 %s48, 1
        %s313 = scalar_lea.sflag [#allocation5], %s312
        %s314 = sand.u32 %s48, 1
        %s315 = smul.addr %s314, 256
        %s316 = scalar_lea.vmem [#allocation4], %s315
        // Predicated region
        $region45: #{tpu_custom_call.1} parent=43 // pred_check
          %p317 = pneg %p61
        $region46: #{tpu_custom_call.1} parent=43 // pred_check_branch
          %319 = sbr.rel (%p317) target = $region48
        $region47: #{tpu_custom_call.1} parent=43 // pred_region
          %320 = dma.done %s313, 4096
        $region48: #{tpu_custom_call.1} parent=43 // pred_fallthru
          _
        %s321 = sand.u32 %s26, 1
        %s322 = scalar_lea.sflag [#allocation8], %s321
        %s323 = sand.u32 %s126, 1
        %s324 = smul.addr %s323, 64
        %s325 = scalar_lea.vmem [#allocation7], %s324
        // Predicated region
        $region49: #{tpu_custom_call.1} parent=43 // pred_check
          %p326 = pneg %p139
        $region50: #{tpu_custom_call.1} parent=43 // pred_check_branch
          %328 = sbr.rel (%p326) target = $region52
        $region51: #{tpu_custom_call.1} parent=43 // pred_region
          %329 = dma.done %s322, 1024
        $region52: #{tpu_custom_call.1} parent=43 // pred_fallthru
          _
        // Predicated region
        $region53: #{tpu_custom_call.1} parent=43 // pred_check
          %p330 = pneg %p160
        $region54: #{tpu_custom_call.1} parent=43 // pred_check_branch
          %332 = sbr.rel (%p330) target = $region56
        $region55: #{tpu_custom_call.1} parent=43 // pred_region
          %333 = dma.done [#allocation8], 2048
        $region56: #{tpu_custom_call.1} parent=43 // pred_fallthru
          _
        %s334 = sand.u32 %s48, 1
        %s335 = scalar_lea.sflag [#allocation5], %s334
        %s336 = sand.u32 %s48, 1
        %s337 = smul.addr %s336, 256
        %s338 = scalar_lea.vmem [#allocation4], %s337
        %p339 = pneg %p61
        %p340 = pneg %p58
        %s341 = smul.u32 16, %s30
        %p342 = scmp.lt.s32.totalorder %s341, 31
        %s343 = scalar_select %p342, %s341, 31
        %s344 = smul.addr %s343, 8
        %s345 = scalar_lea.vmem %s1, %s344
        %p346 = pneg %p87
        %p347 = pneg %p84
        %s348 = smul.u32 64, %s31
        %p349 = scmp.lt.s32.totalorder %s348, 63
        %s350 = scalar_select %p349, %s348, 63
        %s351 = smul.addr %s350, 4
        %s352 = scalar_lea.vmem %s2, %s351
        %p353 = pneg %p113
        %p354 = pneg %p110
        %s355 = sand.u32 %s26, 1
        %s356 = scalar_lea.sflag [#allocation8], %s355
        %s357 = sand.u32 %s126, 1
        %s358 = smul.addr %s357, 64
        %s359 = scalar_lea.vmem [#allocation7], %s358
        %p360 = pneg %p139
        %p361 = pneg %p136
        %p362 = pneg %p160
        %p363 = pneg %p157
        %p364 = pneg %p181
        %p365 = pneg %p178
        %p366 = pneg %p207
        %p367 = pneg %p204
        %s368 = sand.u32 %s194, 1
        %s369 = scalar_lea.sflag [#allocation6], %s368
        %s370 = sand.u32 %s194, 1
        %s371 = smul.addr %s370, 64
        %s372 = scalar_lea.vmem [#allocation10], %s371
        %s373 = smul.u32 16, %s30
        %s374 = smul.u32 4, %s31
        %s375 = smul.u32 16, %s30
        %p376 = scmp.lt.s32.totalorder %s375, 31
        %s377 = scalar_select %p376, %s375, 31
        %s378 = smul.addr %s377, 8
        %s379 = scalar_lea.vmem %s1, %s378
        %s380 = smul.u32 16, %s30
        %s381 = smul.u32 64, %s31
        %p382 = scmp.lt.s32.totalorder %s381, 63
        %s383 = scalar_select %p382, %s381, 63
        %s384 = smul.addr %s383, 4
        %s385 = scalar_lea.vmem %s2, %s384
        %s386 = smul.u32 64, %s31
        %s387 = smul.u32 16, %s30
        %s388 = smul.u32 16, %s30
        %p390 = scmp.eq.s32.totalorder %s31, 0
        // Predicated region
        $region57: #{tpu_custom_call.1} parent=43 // pred_check
          %p391 = pneg %p390
        $region58: #{tpu_custom_call.1} parent=43 // pred_check_branch
          %393 = sbr.rel (%p391) target = $region60
        $region59: #{tpu_custom_call.1} parent=43 // pred_region
          %394 = vst [vmem:[#allocation2] sm:$0xff] 0.0
          %395 = vst [vmem:[#allocation2 + $0x8] sm:$0xff] 0.0
          %396 = vst [vmem:[#allocation2 + $0x10] sm:$0xff] 0.0
          %397 = vst [vmem:[#allocation2 + $0x18] sm:$0xff] 0.0
          %398 = vst [vmem:[#allocation2 + $0x20] sm:$0xff] 0.0
          %399 = vst [vmem:[#allocation2 + $0x28] sm:$0xff] 0.0
          %400 = vst [vmem:[#allocation2 + $0x30] sm:$0xff] 0.0
          %401 = vst [vmem:[#allocation2 + $0x38] sm:$0xff] 0.0
          %402 = vst [vmem:[#allocation2 + $0x40] sm:$0xff] 0.0
          %403 = vst [vmem:[#allocation2 + $0x48] sm:$0xff] 0.0
          %404 = vst [vmem:[#allocation2 + $0x50] sm:$0xff] 0.0
          %405 = vst [vmem:[#allocation2 + $0x58] sm:$0xff] 0.0
          %406 = vst [vmem:[#allocation2 + $0x60] sm:$0xff] 0.0
          %407 = vst [vmem:[#allocation2 + $0x68] sm:$0xff] 0.0
          %408 = vst [vmem:[#allocation2 + $0x70] sm:$0xff] 0.0
          %409 = vst [vmem:[#allocation2 + $0x78] sm:$0xff] 0.0
          %v410 = vld [vmem:[%s325] sm:$0xf]
          %v411 = vld [vmem:[%s325 + $0x4] sm:$0xf]
          %v412 = vld [vmem:[%s325 + $0x8] sm:$0xf]
          %v413 = vld [vmem:[%s325 + $0xc] sm:$0xf]
          %v414 = vld [vmem:[%s325 + $0x10] sm:$0xf]
          %v415 = vld [vmem:[%s325 + $0x14] sm:$0xf]
          %v416 = vld [vmem:[%s325 + $0x18] sm:$0xf]
          %v417 = vld [vmem:[%s325 + $0x1c] sm:$0xf]
          %v418 = vld [vmem:[%s325 + $0x20] sm:$0xf]
          %v419 = vld [vmem:[%s325 + $0x24] sm:$0xf]
          %v420 = vld [vmem:[%s325 + $0x28] sm:$0xf]
          %v421 = vld [vmem:[%s325 + $0x2c] sm:$0xf]
          %v422 = vld [vmem:[%s325 + $0x30] sm:$0xf]
          %v423 = vld [vmem:[%s325 + $0x34] sm:$0xf]
          %v424 = vld [vmem:[%s325 + $0x38] sm:$0xf]
          %v425 = vld [vmem:[%s325 + $0x3c] sm:$0xf]
          %426 = vst [vmem:[#allocation3] sm:$0xf] %v410
          %427 = vst [vmem:[#allocation3 + $0x8] sm:$0xf] %v411
          %428 = vst [vmem:[#allocation3 + $0x10] sm:$0xf] %v412
          %429 = vst [vmem:[#allocation3 + $0x18] sm:$0xf] %v413
          %430 = vst [vmem:[#allocation3 + $0x20] sm:$0xf] %v414
          %431 = vst [vmem:[#allocation3 + $0x28] sm:$0xf] %v415
          %432 = vst [vmem:[#allocation3 + $0x30] sm:$0xf] %v416
          %433 = vst [vmem:[#allocation3 + $0x38] sm:$0xf] %v417
          %434 = vst [vmem:[#allocation3 + $0x40] sm:$0xf] %v418
          %435 = vst [vmem:[#allocation3 + $0x48] sm:$0xf] %v419
          %436 = vst [vmem:[#allocation3 + $0x50] sm:$0xf] %v420
          %437 = vst [vmem:[#allocation3 + $0x58] sm:$0xf] %v421
          %438 = vst [vmem:[#allocation3 + $0x60] sm:$0xf] %v422
          %439 = vst [vmem:[#allocation3 + $0x68] sm:$0xf] %v423
          %440 = vst [vmem:[#allocation3 + $0x70] sm:$0xf] %v424
          %441 = vst [vmem:[#allocation3 + $0x78] sm:$0xf] %v425
        $region60: #{tpu_custom_call.1} parent=43 // pred_fallthru
          _
        %v442 = vld [vmem:[#allocation2] sm:$0xff]
        %v443 = vld [vmem:[#allocation2 + $0x8] sm:$0xff]
        %v444 = vld [vmem:[#allocation2 + $0x10] sm:$0xff]
        %v445 = vld [vmem:[#allocation2 + $0x18] sm:$0xff]
        %v446 = vld [vmem:[#allocation2 + $0x20] sm:$0xff]
        %v447 = vld [vmem:[#allocation2 + $0x28] sm:$0xff]
        %v448 = vld [vmem:[#allocation2 + $0x30] sm:$0xff]
        %v449 = vld [vmem:[#allocation2 + $0x38] sm:$0xff]
        %v450 = vld [vmem:[#allocation2 + $0x40] sm:$0xff]
        %v451 = vld [vmem:[#allocation2 + $0x48] sm:$0xff]
        %v452 = vld [vmem:[#allocation2 + $0x50] sm:$0xff]
        %v453 = vld [vmem:[#allocation2 + $0x58] sm:$0xff]
        %v454 = vld [vmem:[#allocation2 + $0x60] sm:$0xff]
        %v455 = vld [vmem:[#allocation2 + $0x68] sm:$0xff]
        %v456 = vld [vmem:[#allocation2 + $0x70] sm:$0xff]
        %v457 = vld [vmem:[#allocation2 + $0x78] sm:$0xff]
        %v458 = vld [vmem:[%s316] sm:$0xff]
        %v459 = vld [vmem:[%s316 + $0x8] sm:$0xff]
        %v460 = vld [vmem:[%s316 + $0x10] sm:$0xff]
        %v461 = vld [vmem:[%s316 + $0x18] sm:$0xff]
        %v462 = vld [vmem:[%s316 + $0x20] sm:$0xff]
        %v463 = vld [vmem:[%s316 + $0x28] sm:$0xff]
        %v464 = vld [vmem:[%s316 + $0x30] sm:$0xff]
        %v465 = vld [vmem:[%s316 + $0x38] sm:$0xff]
        %v466 = vld [vmem:[%s316 + $0x40] sm:$0xff]
        %v467 = vld [vmem:[%s316 + $0x48] sm:$0xff]
        %v468 = vld [vmem:[%s316 + $0x50] sm:$0xff]
        %v469 = vld [vmem:[%s316 + $0x58] sm:$0xff]
        %v470 = vld [vmem:[%s316 + $0x60] sm:$0xff]
        %v471 = vld [vmem:[%s316 + $0x68] sm:$0xff]
        %v472 = vld [vmem:[%s316 + $0x70] sm:$0xff]
        %v473 = vld [vmem:[%s316 + $0x78] sm:$0xff]
        %v474 = vld [vmem:[%s316 + $0x80] sm:$0xff]
        %v475 = vld [vmem:[%s316 + $0x88] sm:$0xff]
        %v476 = vld [vmem:[%s316 + $0x90] sm:$0xff]
        %v477 = vld [vmem:[%s316 + $0x98] sm:$0xff]
        %v478 = vld [vmem:[%s316 + $0xa0] sm:$0xff]
        %v479 = vld [vmem:[%s316 + $0xa8] sm:$0xff]
        %v480 = vld [vmem:[%s316 + $0xb0] sm:$0xff]
        %v481 = vld [vmem:[%s316 + $0xb8] sm:$0xff]
        %v482 = vld [vmem:[%s316 + $0xc0] sm:$0xff]
        %v483 = vld [vmem:[%s316 + $0xc8] sm:$0xff]
        %v484 = vld [vmem:[%s316 + $0xd0] sm:$0xff]
        %v485 = vld [vmem:[%s316 + $0xd8] sm:$0xff]
        %v486 = vld [vmem:[%s316 + $0xe0] sm:$0xff]
        %v487 = vld [vmem:[%s316 + $0xe8] sm:$0xff]
        %v488 = vld [vmem:[%s316 + $0xf0] sm:$0xff]
        %v489 = vld [vmem:[%s316 + $0xf8] sm:$0xff]
        %v490 = vld [vmem:[%s385] sm:$0xf]
        %v491 = vld [vmem:[%s385 + $0x4] sm:$0xf]
        %v492 = vld [vmem:[%s385 + $0x8] sm:$0xf]
        %v493 = vld [vmem:[%s385 + $0xc] sm:$0xf]
        %v494 = vld [vmem:[%s385 + $0x10] sm:$0xf]
        %v495 = vld [vmem:[%s385 + $0x14] sm:$0xf]
        %v496 = vld [vmem:[%s385 + $0x18] sm:$0xf]
        %v497 = vld [vmem:[%s385 + $0x1c] sm:$0xf]
        %v498 = vld [vmem:[%s385 + $0x20] sm:$0xf]
        %v499 = vld [vmem:[%s385 + $0x24] sm:$0xf]
        %v500 = vld [vmem:[%s385 + $0x28] sm:$0xf]
        %v501 = vld [vmem:[%s385 + $0x2c] sm:$0xf]
        %v502 = vld [vmem:[%s385 + $0x30] sm:$0xf]
        %v503 = vld [vmem:[%s385 + $0x34] sm:$0xf]
        %v504 = vld [vmem:[%s385 + $0x38] sm:$0xf]
        %v505 = vld [vmem:[%s385 + $0x3c] sm:$0xf]
        %v506 = vld [vmem:[%s385 + $0x40] sm:$0xf]
        %v507 = vld [vmem:[%s385 + $0x44] sm:$0xf]
        %v508 = vld [vmem:[%s385 + $0x48] sm:$0xf]
        %v509 = vld [vmem:[%s385 + $0x4c] sm:$0xf]
        %v510 = vld [vmem:[%s385 + $0x50] sm:$0xf]
        %v511 = vld [vmem:[%s385 + $0x54] sm:$0xf]
        %v512 = vld [vmem:[%s385 + $0x58] sm:$0xf]
        %v513 = vld [vmem:[%s385 + $0x5c] sm:$0xf]
        %v514 = vld [vmem:[%s385 + $0x60] sm:$0xf]
        %v515 = vld [vmem:[%s385 + $0x64] sm:$0xf]
        %v516 = vld [vmem:[%s385 + $0x68] sm:$0xf]
        %v517 = vld [vmem:[%s385 + $0x6c] sm:$0xf]
        %v518 = vld [vmem:[%s385 + $0x70] sm:$0xf]
        %v519 = vld [vmem:[%s385 + $0x74] sm:$0xf]
        %v520 = vld [vmem:[%s385 + $0x78] sm:$0xf]
        %v521 = vld [vmem:[%s385 + $0x7c] sm:$0xf]
        %v522 = vld [vmem:[%s385 + $0x80] sm:$0xf]
        %v523 = vld [vmem:[%s385 + $0x84] sm:$0xf]
        %v524 = vld [vmem:[%s385 + $0x88] sm:$0xf]
        %v525 = vld [vmem:[%s385 + $0x8c] sm:$0xf]
        %v526 = vld [vmem:[%s385 + $0x90] sm:$0xf]
        %v527 = vld [vmem:[%s385 + $0x94] sm:$0xf]
        %v528 = vld [vmem:[%s385 + $0x98] sm:$0xf]
        %v529 = vld [vmem:[%s385 + $0x9c] sm:$0xf]
        %v530 = vld [vmem:[%s385 + $0xa0] sm:$0xf]
        %v531 = vld [vmem:[%s385 + $0xa4] sm:$0xf]
        %v532 = vld [vmem:[%s385 + $0xa8] sm:$0xf]
        %v533 = vld [vmem:[%s385 + $0xac] sm:$0xf]
        %v534 = vld [vmem:[%s385 + $0xb0] sm:$0xf]
        %v535 = vld [vmem:[%s385 + $0xb4] sm:$0xf]
        %v536 = vld [vmem:[%s385 + $0xb8] sm:$0xf]
        %v537 = vld [vmem:[%s385 + $0xbc] sm:$0xf]
        %v538 = vld [vmem:[%s385 + $0xc0] sm:$0xf]
        %v539 = vld [vmem:[%s385 + $0xc4] sm:$0xf]
        %v540 = vld [vmem:[%s385 + $0xc8] sm:$0xf]
        %v541 = vld [vmem:[%s385 + $0xcc] sm:$0xf]
        %v542 = vld [vmem:[%s385 + $0xd0] sm:$0xf]
        %v543 = vld [vmem:[%s385 + $0xd4] sm:$0xf]
        %v544 = vld [vmem:[%s385 + $0xd8] sm:$0xf]
        %v545 = vld [vmem:[%s385 + $0xdc] sm:$0xf]
        %v546 = vld [vmem:[%s385 + $0xe0] sm:$0xf]
        %v547 = vld [vmem:[%s385 + $0xe4] sm:$0xf]
        %v548 = vld [vmem:[%s385 + $0xe8] sm:$0xf]
        %v549 = vld [vmem:[%s385 + $0xec] sm:$0xf]
        %v550 = vld [vmem:[%s385 + $0xf0] sm:$0xf]
        %v551 = vld [vmem:[%s385 + $0xf4] sm:$0xf]
        %v552 = vld [vmem:[%s385 + $0xf8] sm:$0xf]
        %v553 = vld [vmem:[%s385 + $0xfc] sm:$0xf]
        %v586 = vunpack.c.l.b16 %v458
        %v587 = vunpack.c.h.b16 %v458
        %v588 = vunpack.c.l.b16 %v459
        %v589 = vunpack.c.h.b16 %v459
        %v590 = vunpack.c.l.b16 %v460
        %v591 = vunpack.c.h.b16 %v460
        %v592 = vunpack.c.l.b16 %v461
        %v593 = vunpack.c.h.b16 %v461
        %v594 = vunpack.c.l.b16 %v462
        %v595 = vunpack.c.h.b16 %v462
        %v596 = vunpack.c.l.b16 %v463
        %v597 = vunpack.c.h.b16 %v463
        %v598 = vunpack.c.l.b16 %v464
        %v599 = vunpack.c.h.b16 %v464
        %v600 = vunpack.c.l.b16 %v465
        %v601 = vunpack.c.h.b16 %v465
        %v602 = vunpack.c.l.b16 %v466
        %v603 = vunpack.c.h.b16 %v466
        %v604 = vunpack.c.l.b16 %v467
        %v605 = vunpack.c.h.b16 %v467
        %v606 = vunpack.c.l.b16 %v468
        %v607 = vunpack.c.h.b16 %v468
        %v608 = vunpack.c.l.b16 %v469
        %v609 = vunpack.c.h.b16 %v469
        %v610 = vunpack.c.l.b16 %v470
        %v611 = vunpack.c.h.b16 %v470
        %v612 = vunpack.c.l.b16 %v471
        %v613 = vunpack.c.h.b16 %v471
        %v614 = vunpack.c.l.b16 %v472
        %v615 = vunpack.c.h.b16 %v472
        %v616 = vunpack.c.l.b16 %v473
        %v617 = vunpack.c.h.b16 %v473
        %v618 = vunpack.c.l.b16 %v474
        %v619 = vunpack.c.h.b16 %v474
        %v620 = vunpack.c.l.b16 %v475
        %v621 = vunpack.c.h.b16 %v475
        %v622 = vunpack.c.l.b16 %v476
        %v623 = vunpack.c.h.b16 %v476
        %v624 = vunpack.c.l.b16 %v477
        %v625 = vunpack.c.h.b16 %v477
        %v626 = vunpack.c.l.b16 %v478
        %v627 = vunpack.c.h.b16 %v478
        %v628 = vunpack.c.l.b16 %v479
        %v629 = vunpack.c.h.b16 %v479
        %v630 = vunpack.c.l.b16 %v480
        %v631 = vunpack.c.h.b16 %v480
        %v632 = vunpack.c.l.b16 %v481
        %v633 = vunpack.c.h.b16 %v481
        %v634 = vunpack.c.l.b16 %v482
        %v635 = vunpack.c.h.b16 %v482
        %v636 = vunpack.c.l.b16 %v483
        %v637 = vunpack.c.h.b16 %v483
        %v638 = vunpack.c.l.b16 %v484
        %v639 = vunpack.c.h.b16 %v484
        %v640 = vunpack.c.l.b16 %v485
        %v641 = vunpack.c.h.b16 %v485
        %v642 = vunpack.c.l.b16 %v486
        %v643 = vunpack.c.h.b16 %v486
        %v644 = vunpack.c.l.b16 %v487
        %v645 = vunpack.c.h.b16 %v487
        %v646 = vunpack.c.l.b16 %v488
        %v647 = vunpack.c.h.b16 %v488
        %v648 = vunpack.c.l.b16 %v489
        %v649 = vunpack.c.h.b16 %v489
        %v650 = vpack.c.b16 %v590, %v586
        %v651 = vpack.c.b16 %v591, %v587
        %v652 = vpack.c.b16 %v592, %v588
        %v653 = vpack.c.b16 %v593, %v589
        %v654 = vpack.c.b16 %v598, %v594
        %v655 = vpack.c.b16 %v599, %v595
        %v656 = vpack.c.b16 %v600, %v596
        %v657 = vpack.c.b16 %v601, %v597
        %v658 = vpack.c.b16 %v606, %v602
        %v659 = vpack.c.b16 %v607, %v603
        %v660 = vpack.c.b16 %v608, %v604
        %v661 = vpack.c.b16 %v609, %v605
        %v662 = vpack.c.b16 %v614, %v610
        %v663 = vpack.c.b16 %v615, %v611
        %v664 = vpack.c.b16 %v616, %v612
        %v665 = vpack.c.b16 %v617, %v613
        %v666 = vpack.c.b16 %v622, %v618
        %v667 = vpack.c.b16 %v623, %v619
        %v668 = vpack.c.b16 %v624, %v620
        %v669 = vpack.c.b16 %v625, %v621
        %v670 = vpack.c.b16 %v630, %v626
        %v671 = vpack.c.b16 %v631, %v627
        %v672 = vpack.c.b16 %v632, %v628
        %v673 = vpack.c.b16 %v633, %v629
        %v674 = vpack.c.b16 %v638, %v634
        %v675 = vpack.c.b16 %v639, %v635
        %v676 = vpack.c.b16 %v640, %v636
        %v677 = vpack.c.b16 %v641, %v637
        %v678 = vpack.c.b16 %v646, %v642
        %v679 = vpack.c.b16 %v647, %v643
        %v680 = vpack.c.b16 %v648, %v644
        %v681 = vpack.c.b16 %v649, %v645
        %v778 = vunpack.c.l.b16 %v490
        %v779 = vunpack.c.l.b16 %v491
        %v780 = vunpack.c.l.b16 %v492
        %v781 = vunpack.c.l.b16 %v493
        %v782 = vunpack.c.l.b16 %v494
        %v783 = vunpack.c.l.b16 %v495
        %v784 = vunpack.c.l.b16 %v496
        %v785 = vunpack.c.l.b16 %v497
        %v786 = vunpack.c.l.b16 %v498
        %v787 = vunpack.c.l.b16 %v499
        %v788 = vunpack.c.l.b16 %v500
        %v789 = vunpack.c.l.b16 %v501
        %v790 = vunpack.c.l.b16 %v502
        %v791 = vunpack.c.l.b16 %v503
        %v792 = vunpack.c.l.b16 %v504
        %v793 = vunpack.c.l.b16 %v505
        %v794 = vunpack.c.l.b16 %v506
        %v795 = vunpack.c.l.b16 %v507
        %v796 = vunpack.c.l.b16 %v508
        %v797 = vunpack.c.l.b16 %v509
        %v798 = vunpack.c.l.b16 %v510
        %v799 = vunpack.c.l.b16 %v511
        %v800 = vunpack.c.l.b16 %v512
        %v801 = vunpack.c.l.b16 %v513
        %v802 = vunpack.c.l.b16 %v514
        %v803 = vunpack.c.l.b16 %v515
        %v804 = vunpack.c.l.b16 %v516
        %v805 = vunpack.c.l.b16 %v517
        %v806 = vunpack.c.l.b16 %v518
        %v807 = vunpack.c.l.b16 %v519
        %v808 = vunpack.c.l.b16 %v520
        %v809 = vunpack.c.l.b16 %v521
        %v810 = vunpack.c.l.b16 %v522
        %v811 = vunpack.c.l.b16 %v523
        %v812 = vunpack.c.l.b16 %v524
        %v813 = vunpack.c.l.b16 %v525
        %v814 = vunpack.c.l.b16 %v526
        %v815 = vunpack.c.l.b16 %v527
        %v816 = vunpack.c.l.b16 %v528
        %v817 = vunpack.c.l.b16 %v529
        %v818 = vunpack.c.l.b16 %v530
        %v819 = vunpack.c.l.b16 %v531
        %v820 = vunpack.c.l.b16 %v532
        %v821 = vunpack.c.l.b16 %v533
        %v822 = vunpack.c.l.b16 %v534
        %v823 = vunpack.c.l.b16 %v535
        %v824 = vunpack.c.l.b16 %v536
        %v825 = vunpack.c.l.b16 %v537
        %v826 = vunpack.c.l.b16 %v538
        %v827 = vunpack.c.l.b16 %v539
        %v828 = vunpack.c.l.b16 %v540
        %v829 = vunpack.c.l.b16 %v541
        %v830 = vunpack.c.l.b16 %v542
        %v831 = vunpack.c.l.b16 %v543
        %v832 = vunpack.c.l.b16 %v544
        %v833 = vunpack.c.l.b16 %v545
        %v834 = vunpack.c.l.b16 %v546
        %v835 = vunpack.c.l.b16 %v547
        %v836 = vunpack.c.l.b16 %v548
        %v837 = vunpack.c.l.b16 %v549
        %v838 = vunpack.c.l.b16 %v550
        %v839 = vunpack.c.l.b16 %v551
        %v840 = vunpack.c.l.b16 %v552
        %v841 = vunpack.c.l.b16 %v553
        %v842 = vpack.c.b16 %v779, %v778
        %v843 = vpack.c.b16 %v781, %v780
        %v844 = vpack.c.b16 %v783, %v782
        %v845 = vpack.c.b16 %v785, %v784
        %v846 = vpack.c.b16 %v787, %v786
        %v847 = vpack.c.b16 %v789, %v788
        %v848 = vpack.c.b16 %v791, %v790
        %v849 = vpack.c.b16 %v793, %v792
        %v850 = vpack.c.b16 %v795, %v794
        %v851 = vpack.c.b16 %v797, %v796
        %v852 = vpack.c.b16 %v799, %v798
        %v853 = vpack.c.b16 %v801, %v800
        %v854 = vpack.c.b16 %v803, %v802
        %v855 = vpack.c.b16 %v805, %v804
        %v856 = vpack.c.b16 %v807, %v806
        %v857 = vpack.c.b16 %v809, %v808
        %v858 = vpack.c.b16 %v811, %v810
        %v859 = vpack.c.b16 %v813, %v812
        %v860 = vpack.c.b16 %v815, %v814
        %v861 = vpack.c.b16 %v817, %v816
        %v862 = vpack.c.b16 %v819, %v818
        %v863 = vpack.c.b16 %v821, %v820
        %v864 = vpack.c.b16 %v823, %v822
        %v865 = vpack.c.b16 %v825, %v824
        %v866 = vpack.c.b16 %v827, %v826
        %v867 = vpack.c.b16 %v829, %v828
        %v868 = vpack.c.b16 %v831, %v830
        %v869 = vpack.c.b16 %v833, %v832
        %v870 = vpack.c.b16 %v835, %v834
        %v871 = vpack.c.b16 %v837, %v836
        %v872 = vpack.c.b16 %v839, %v838
        %v873 = vpack.c.b16 %v841, %v840
        %906 = vmatprep.subr.bf16.mxu0 0
        %907 = vmatpush1.bf16.msra.mxu0 %v849
        %908 = vmatprep.subr.bf16.mxu0 0
        %909 = vmatpush1.bf16.msra.mxu0 %v848
        %910 = vmatprep.subr.bf16.mxu0 0
        %911 = vmatpush1.bf16.msra.mxu0 %v847
        %912 = vmatprep.subr.bf16.mxu0 0
        %913 = vmatpush1.bf16.msra.mxu0 %v846
        %914 = vmatprep.subr.bf16.mxu0 0
        %915 = vmatpush1.bf16.msra.mxu0 %v845
        %916 = vmatprep.subr.bf16.mxu0 0
        %917 = vmatpush1.bf16.msra.mxu0 %v844
        %918 = vmatprep.subr.bf16.mxu0 0
        %919 = vmatpush1.bf16.msra.mxu0 %v843
        %920 = vmatprep.subr.bf16.mxu0 0
        %921 = vmatpush1.bf16.msra.mxu0 %v842
        %922 = vmatprep.subr.bf16.mxu0 0
        %923 = vmatpush2.bf16.msra.mxu0 %v857
        %924 = vmatprep.subr.bf16.mxu0 0
        %925 = vmatpush2.bf16.msra.mxu0 %v856
        %926 = vmatprep.subr.bf16.mxu0 0
        %927 = vmatpush2.bf16.msra.mxu0 %v855
        %928 = vmatprep.subr.bf16.mxu0 0
        %929 = vmatpush2.bf16.msra.mxu0 %v854
        %930 = vmatprep.subr.bf16.mxu0 0
        %931 = vmatpush2.bf16.msra.mxu0 %v853
        %932 = vmatprep.subr.bf16.mxu0 0
        %933 = vmatpush2.bf16.msra.mxu0 %v852
        %934 = vmatprep.subr.bf16.mxu0 0
        %935 = vmatpush2.bf16.msra.mxu0 %v851
        %936 = vmatprep.subr.bf16.mxu0 0
        %937 = vmatpush2.bf16.msra.mxu0 %v850
        %938 = vmatprep.mubr.bf16.mxu0 %v651
        %939 = vmatmul.mubr.bf16.gmra.mxu0 %v650
        %v940 = vpop.f32.mrf.mxu0
        %v941 = vadd.f32 0.0, %v940
        %v942 = vpop.f32.mrf.mxu0
        %v943 = vpop.f32.mrf.mxu0
        %v944 = vadd.f32 0.0, %v943
        %v945 = vpop.f32.mrf.mxu0
        %946 = vmatprep.mubr.bf16.mxu0 %v655
        %947 = vmatmul.mubr.bf16.gmra.mxu0 %v654
        %v948 = vpop.f32.mrf.mxu0
        %v949 = vadd.f32 0.0, %v948
        %v950 = vpop.f32.mrf.mxu0
        %v951 = vpop.f32.mrf.mxu0
        %v952 = vadd.f32 0.0, %v951
        %v953 = vpop.f32.mrf.mxu0
        %954 = vmatprep.mubr.bf16.mxu0 %v659
        %955 = vmatmul.mubr.bf16.gmra.mxu0 %v658
        %v956 = vpop.f32.mrf.mxu0
        %v957 = vadd.f32 0.0, %v956
        %v958 = vpop.f32.mrf.mxu0
        %v959 = vpop.f32.mrf.mxu0
        %v960 = vadd.f32 0.0, %v959
        %v961 = vpop.f32.mrf.mxu0
        %962 = vmatprep.mubr.bf16.mxu0 %v663
        %963 = vmatmul.mubr.bf16.gmra.mxu0 %v662
        %v964 = vpop.f32.mrf.mxu0
        %v965 = vadd.f32 0.0, %v964
        %v966 = vpop.f32.mrf.mxu0
        %v967 = vpop.f32.mrf.mxu0
        %v968 = vadd.f32 0.0, %v967
        %v969 = vpop.f32.mrf.mxu0
        %970 = vmatprep.mubr.bf16.mxu0 %v667
        %971 = vmatmul.mubr.bf16.gmra.mxu0 %v666
        %v972 = vpop.f32.mrf.mxu0
        %v973 = vadd.f32 0.0, %v972
        %v974 = vpop.f32.mrf.mxu0
        %v975 = vpop.f32.mrf.mxu0
        %v976 = vadd.f32 0.0, %v975
        %v977 = vpop.f32.mrf.mxu0
        %978 = vmatprep.mubr.bf16.mxu0 %v671
        %979 = vmatmul.mubr.bf16.gmra.mxu0 %v670
        %v980 = vpop.f32.mrf.mxu0
        %v981 = vadd.f32 0.0, %v980
        %v982 = vpop.f32.mrf.mxu0
        %v983 = vpop.f32.mrf.mxu0
        %v984 = vadd.f32 0.0, %v983
        %v985 = vpop.f32.mrf.mxu0
        %986 = vmatprep.mubr.bf16.mxu0 %v675
        %987 = vmatmul.mubr.bf16.gmra.mxu0 %v674
        %v988 = vpop.f32.mrf.mxu0
        %v989 = vadd.f32 0.0, %v988
        %v990 = vpop.f32.mrf.mxu0
        %v991 = vpop.f32.mrf.mxu0
        %v992 = vadd.f32 0.0, %v991
        %v993 = vpop.f32.mrf.mxu0
        %994 = vmatprep.mubr.bf16.mxu0 %v679
        %995 = vmatmul.mubr.bf16.gmra.mxu0 %v678
        %v996 = vpop.f32.mrf.mxu0
        %v997 = vadd.f32 0.0, %v996
        %v998 = vpop.f32.mrf.mxu0
        %v999 = vpop.f32.mrf.mxu0
        %v1000 = vadd.f32 0.0, %v999
        %v1001 = vpop.f32.mrf.mxu0
        %1002 = vdwg.mxu0
        %1003 = vmatprep.subr.bf16.mxu0 0
        %1004 = vmatpush1.bf16.msra.mxu0 %v865
        %1005 = vmatprep.subr.bf16.mxu0 0
        %1006 = vmatpush1.bf16.msra.mxu0 %v864
        %1007 = vmatprep.subr.bf16.mxu0 0
        %1008 = vmatpush1.bf16.msra.mxu0 %v863
        %1009 = vmatprep.subr.bf16.mxu0 0
        %1010 = vmatpush1.bf16.msra.mxu0 %v862
        %1011 = vmatprep.subr.bf16.mxu0 0
        %1012 = vmatpush1.bf16.msra.mxu0 %v861
        %1013 = vmatprep.subr.bf16.mxu0 0
        %1014 = vmatpush1.bf16.msra.mxu0 %v860
        %1015 = vmatprep.subr.bf16.mxu0 0
        %1016 = vmatpush1.bf16.msra.mxu0 %v859
        %1017 = vmatprep.subr.bf16.mxu0 0
        %1018 = vmatpush1.bf16.msra.mxu0 %v858
        %1019 = vmatprep.subr.bf16.mxu0 0
        %1020 = vmatpush2.bf16.msra.mxu0 %v873
        %1021 = vmatprep.subr.bf16.mxu0 0
        %1022 = vmatpush2.bf16.msra.mxu0 %v872
        %1023 = vmatprep.subr.bf16.mxu0 0
        %1024 = vmatpush2.bf16.msra.mxu0 %v871
        %1025 = vmatprep.subr.bf16.mxu0 0
        %1026 = vmatpush2.bf16.msra.mxu0 %v870
        %1027 = vmatprep.subr.bf16.mxu0 0
        %1028 = vmatpush2.bf16.msra.mxu0 %v869
        %1029 = vmatprep.subr.bf16.mxu0 0
        %1030 = vmatpush2.bf16.msra.mxu0 %v868
        %1031 = vmatprep.subr.bf16.mxu0 0
        %1032 = vmatpush2.bf16.msra.mxu0 %v867
        %1033 = vmatprep.subr.bf16.mxu0 0
        %1034 = vmatpush2.bf16.msra.mxu0 %v866
        %1035 = vmatprep.mubr.bf16.mxu0 %v653
        %1036 = vmatmul.mubr.bf16.gmra.mxu0 %v652
        %v1037 = vpop.f32.mrf.mxu0
        %v1038 = vadd.f32 %v941, %v1037
        %v1039 = vpop.f32.mrf.mxu0
        %v1040 = vpop.f32.mrf.mxu0
        %v1041 = vadd.f32 %v944, %v1040
        %v1042 = vpop.f32.mrf.mxu0
        %1043 = vmatprep.mubr.bf16.mxu0 %v657
        %1044 = vmatmul.mubr.bf16.gmra.mxu0 %v656
        %v1045 = vpop.f32.mrf.mxu0
        %v1046 = vadd.f32 %v949, %v1045
        %v1047 = vpop.f32.mrf.mxu0
        %v1048 = vpop.f32.mrf.mxu0
        %v1049 = vadd.f32 %v952, %v1048
        %v1050 = vpop.f32.mrf.mxu0
        %1051 = vmatprep.mubr.bf16.mxu0 %v661
        %1052 = vmatmul.mubr.bf16.gmra.mxu0 %v660
        %v1053 = vpop.f32.mrf.mxu0
        %v1054 = vadd.f32 %v957, %v1053
        %v1055 = vpop.f32.mrf.mxu0
        %v1056 = vpop.f32.mrf.mxu0
        %v1057 = vadd.f32 %v960, %v1056
        %v1058 = vpop.f32.mrf.mxu0
        %1059 = vmatprep.mubr.bf16.mxu0 %v665
        %1060 = vmatmul.mubr.bf16.gmra.mxu0 %v664
        %v1061 = vpop.f32.mrf.mxu0
        %v1062 = vadd.f32 %v965, %v1061
        %v1063 = vpop.f32.mrf.mxu0
        %v1064 = vpop.f32.mrf.mxu0
        %v1065 = vadd.f32 %v968, %v1064
        %v1066 = vpop.f32.mrf.mxu0
        %1067 = vmatprep.mubr.bf16.mxu0 %v669
        %1068 = vmatmul.mubr.bf16.gmra.mxu0 %v668
        %v1069 = vpop.f32.mrf.mxu0
        %v1070 = vadd.f32 %v973, %v1069
        %v1071 = vpop.f32.mrf.mxu0
        %v1072 = vpop.f32.mrf.mxu0
        %v1073 = vadd.f32 %v976, %v1072
        %v1074 = vpop.f32.mrf.mxu0
        %1075 = vmatprep.mubr.bf16.mxu0 %v673
        %1076 = vmatmul.mubr.bf16.gmra.mxu0 %v672
        %v1077 = vpop.f32.mrf.mxu0
        %v1078 = vadd.f32 %v981, %v1077
        %v1079 = vpop.f32.mrf.mxu0
        %v1080 = vpop.f32.mrf.mxu0
        %v1081 = vadd.f32 %v984, %v1080
        %v1082 = vpop.f32.mrf.mxu0
        %1083 = vmatprep.mubr.bf16.mxu0 %v677
        %1084 = vmatmul.mubr.bf16.gmra.mxu0 %v676
        %v1085 = vpop.f32.mrf.mxu0
        %v1086 = vadd.f32 %v989, %v1085
        %v1087 = vpop.f32.mrf.mxu0
        %v1088 = vpop.f32.mrf.mxu0
        %v1089 = vadd.f32 %v992, %v1088
        %v1090 = vpop.f32.mrf.mxu0
        %1091 = vmatprep.mubr.bf16.mxu0 %v681
        %1092 = vmatmul.mubr.bf16.gmra.mxu0 %v680
        %v1093 = vpop.f32.mrf.mxu0
        %v1094 = vadd.f32 %v997, %v1093
        %v1095 = vpop.f32.mrf.mxu0
        %v1096 = vpop.f32.mrf.mxu0
        %v1097 = vadd.f32 %v1000, %v1096
        %v1098 = vpop.f32.mrf.mxu0
        %1099 = vdwg.mxu0
        %v1100 = vadd.f32 %v442, %v1038
        %v1101 = vadd.f32 %v443, %v1041
        %v1102 = vadd.f32 %v444, %v1046
        %v1103 = vadd.f32 %v445, %v1049
        %v1104 = vadd.f32 %v446, %v1054
        %v1105 = vadd.f32 %v447, %v1057
        %v1106 = vadd.f32 %v448, %v1062
        %v1107 = vadd.f32 %v449, %v1065
        %v1108 = vadd.f32 %v450, %v1070
        %v1109 = vadd.f32 %v451, %v1073
        %v1110 = vadd.f32 %v452, %v1078
        %v1111 = vadd.f32 %v453, %v1081
        %v1112 = vadd.f32 %v454, %v1086
        %v1113 = vadd.f32 %v455, %v1089
        %v1114 = vadd.f32 %v456, %v1094
        %v1115 = vadd.f32 %v457, %v1097
        %1116 = vst [vmem:[#allocation2] sm:$0xff] %v1100
        %1117 = vst [vmem:[#allocation2 + $0x8] sm:$0xff] %v1101
        %1118 = vst [vmem:[#allocation2 + $0x10] sm:$0xff] %v1102
        %1119 = vst [vmem:[#allocation2 + $0x18] sm:$0xff] %v1103
        %1120 = vst [vmem:[#allocation2 + $0x20] sm:$0xff] %v1104
        %1121 = vst [vmem:[#allocation2 + $0x28] sm:$0xff] %v1105
        %1122 = vst [vmem:[#allocation2 + $0x30] sm:$0xff] %v1106
        %1123 = vst [vmem:[#allocation2 + $0x38] sm:$0xff] %v1107
        %1124 = vst [vmem:[#allocation2 + $0x40] sm:$0xff] %v1108
        %1125 = vst [vmem:[#allocation2 + $0x48] sm:$0xff] %v1109
        %1126 = vst [vmem:[#allocation2 + $0x50] sm:$0xff] %v1110
        %1127 = vst [vmem:[#allocation2 + $0x58] sm:$0xff] %v1111
        %1128 = vst [vmem:[#allocation2 + $0x60] sm:$0xff] %v1112
        %1129 = vst [vmem:[#allocation2 + $0x68] sm:$0xff] %v1113
        %1130 = vst [vmem:[#allocation2 + $0x70] sm:$0xff] %v1114
        %1131 = vst [vmem:[#allocation2 + $0x78] sm:$0xff] %v1115
        // Predicated region
        $region61: #{tpu_custom_call.1} parent=43 // pred_check
          %p1132 = pneg %p390
        $region62: #{tpu_custom_call.1} parent=43 // pred_check_branch
          %1134 = sbr.rel (%p1132) target = $region64
        $region63: #{tpu_custom_call.1} parent=43 // pred_region
          %v1135 = vld [vmem:[%s379] sm:$0xff]
          %v1136 = vld [vmem:[%s379 + $0x8] sm:$0xff]
          %v1137 = vld [vmem:[%s379 + $0x10] sm:$0xff]
          %v1138 = vld [vmem:[%s379 + $0x18] sm:$0xff]
          %v1139 = vld [vmem:[%s379 + $0x20] sm:$0xff]
          %v1140 = vld [vmem:[%s379 + $0x28] sm:$0xff]
          %v1141 = vld [vmem:[%s379 + $0x30] sm:$0xff]
          %v1142 = vld [vmem:[%s379 + $0x38] sm:$0xff]
          %v1143 = vld [vmem:[%s379 + $0x40] sm:$0xff]
          %v1144 = vld [vmem:[%s379 + $0x48] sm:$0xff]
          %v1145 = vld [vmem:[%s379 + $0x50] sm:$0xff]
          %v1146 = vld [vmem:[%s379 + $0x58] sm:$0xff]
          %v1147 = vld [vmem:[%s379 + $0x60] sm:$0xff]
          %v1148 = vld [vmem:[%s379 + $0x68] sm:$0xff]
          %v1149 = vld [vmem:[%s379 + $0x70] sm:$0xff]
          %v1150 = vld [vmem:[%s379 + $0x78] sm:$0xff]
          %v1151 = vmax.f32 %v1135, 1.0
          %v1152 = vmax.f32 %v1136, 1.0
          %v1153 = vmax.f32 %v1137, 1.0
          %v1154 = vmax.f32 %v1138, 1.0
          %v1155 = vmax.f32 %v1139, 1.0
          %v1156 = vmax.f32 %v1140, 1.0
          %v1157 = vmax.f32 %v1141, 1.0
          %v1158 = vmax.f32 %v1142, 1.0
          %v1159 = vmax.f32 %v1143, 1.0
          %v1160 = vmax.f32 %v1144, 1.0
          %v1161 = vmax.f32 %v1145, 1.0
          %v1162 = vmax.f32 %v1146, 1.0
          %v1163 = vmax.f32 %v1147, 1.0
          %v1164 = vmax.f32 %v1148, 1.0
          %v1165 = vmax.f32 %v1149, 1.0
          %v1166 = vmax.f32 %v1150, 1.0
          %v1167 = vrcp.pop %v1151
          %v1168 = vrcp.pop %v1152
          %v1169 = vrcp.pop %v1153
          %v1170 = vrcp.pop %v1154
          %v1171 = vrcp.pop %v1155
          %v1172 = vrcp.pop %v1156
          %v1173 = vrcp.pop %v1157
          %v1174 = vrcp.pop %v1158
          %v1175 = vrcp.pop %v1159
          %v1176 = vrcp.pop %v1160
          %v1177 = vrcp.pop %v1161
          %v1178 = vrcp.pop %v1162
          %v1179 = vrcp.pop %v1163
          %v1180 = vrcp.pop %v1164
          %v1181 = vrcp.pop %v1165
          %v1182 = vrcp.pop %v1166
          %v1183 = vld [vmem:[#allocation2] sm:$0xff]
          %v1184 = vld [vmem:[#allocation2 + $0x8] sm:$0xff]
          %v1185 = vld [vmem:[#allocation2 + $0x10] sm:$0xff]
          %v1186 = vld [vmem:[#allocation2 + $0x18] sm:$0xff]
          %v1187 = vld [vmem:[#allocation2 + $0x20] sm:$0xff]
          %v1188 = vld [vmem:[#allocation2 + $0x28] sm:$0xff]
          %v1189 = vld [vmem:[#allocation2 + $0x30] sm:$0xff]
          %v1190 = vld [vmem:[#allocation2 + $0x38] sm:$0xff]
          %v1191 = vld [vmem:[#allocation2 + $0x40] sm:$0xff]
          %v1192 = vld [vmem:[#allocation2 + $0x48] sm:$0xff]
          %v1193 = vld [vmem:[#allocation2 + $0x50] sm:$0xff]
          %v1194 = vld [vmem:[#allocation2 + $0x58] sm:$0xff]
          %v1195 = vld [vmem:[#allocation2 + $0x60] sm:$0xff]
          %v1196 = vld [vmem:[#allocation2 + $0x68] sm:$0xff]
          %v1197 = vld [vmem:[#allocation2 + $0x70] sm:$0xff]
          %v1198 = vld [vmem:[#allocation2 + $0x78] sm:$0xff]
          %1200 = vset.pattern.permute.xlu0 0
          %1201 = vperm.xlu0 %1200, %v1167
          %v1202 = vpop.permute.xlu0 %1201
          %1205 = vset.pattern.permute.xlu0 0
          %1206 = vperm.xlu0 %1205, %v1168
          %v1207 = vpop.permute.xlu0 %1206
          %1210 = vset.pattern.permute.xlu0 0
          %1211 = vperm.xlu0 %1210, %v1169
          %v1212 = vpop.permute.xlu0 %1211
          %1215 = vset.pattern.permute.xlu0 0
          %1216 = vperm.xlu0 %1215, %v1170
          %v1217 = vpop.permute.xlu0 %1216
          %1220 = vset.pattern.permute.xlu0 0
          %1221 = vperm.xlu0 %1220, %v1171
          %v1222 = vpop.permute.xlu0 %1221
          %1225 = vset.pattern.permute.xlu0 0
          %1226 = vperm.xlu0 %1225, %v1172
          %v1227 = vpop.permute.xlu0 %1226
          %1230 = vset.pattern.permute.xlu0 0
          %1231 = vperm.xlu0 %1230, %v1173
          %v1232 = vpop.permute.xlu0 %1231
          %1235 = vset.pattern.permute.xlu0 0
          %1236 = vperm.xlu0 %1235, %v1174
          %v1237 = vpop.permute.xlu0 %1236
          %1240 = vset.pattern.permute.xlu0 0
          %1241 = vperm.xlu0 %1240, %v1175
          %v1242 = vpop.permute.xlu0 %1241
          %1245 = vset.pattern.permute.xlu0 0
          %1246 = vperm.xlu0 %1245, %v1176
          %v1247 = vpop.permute.xlu0 %1246
          %1250 = vset.pattern.permute.xlu0 0
          %1251 = vperm.xlu0 %1250, %v1177
          %v1252 = vpop.permute.xlu0 %1251
          %1255 = vset.pattern.permute.xlu0 0
          %1256 = vperm.xlu0 %1255, %v1178
          %v1257 = vpop.permute.xlu0 %1256
          %1260 = vset.pattern.permute.xlu0 0
          %1261 = vperm.xlu0 %1260, %v1179
          %v1262 = vpop.permute.xlu0 %1261
          %1265 = vset.pattern.permute.xlu0 0
          %1266 = vperm.xlu0 %1265, %v1180
          %v1267 = vpop.permute.xlu0 %1266
          %1270 = vset.pattern.permute.xlu0 0
          %1271 = vperm.xlu0 %1270, %v1181
          %v1272 = vpop.permute.xlu0 %1271
          %1275 = vset.pattern.permute.xlu0 0
          %1276 = vperm.xlu0 %1275, %v1182
          %v1277 = vpop.permute.xlu0 %1276
          %v1279 = vmul.f32 %v1183, %v1202
          %v1280 = vmul.f32 %v1184, %v1207
          %v1281 = vmul.f32 %v1185, %v1212
          %v1282 = vmul.f32 %v1186, %v1217
          %v1283 = vmul.f32 %v1187, %v1222
          %v1284 = vmul.f32 %v1188, %v1227
          %v1285 = vmul.f32 %v1189, %v1232
          %v1286 = vmul.f32 %v1190, %v1237
          %v1287 = vmul.f32 %v1191, %v1242
          %v1288 = vmul.f32 %v1192, %v1247
          %v1289 = vmul.f32 %v1193, %v1252
          %v1290 = vmul.f32 %v1194, %v1257
          %v1291 = vmul.f32 %v1195, %v1262
          %v1292 = vmul.f32 %v1196, %v1267
          %v1293 = vmul.f32 %v1197, %v1272
          %v1294 = vmul.f32 %v1198, %v1277
          %v1295 = vpack.c.bf16 %v1280, %v1279
          %v1296 = vpack.c.bf16 %v1282, %v1281
          %v1297 = vpack.c.bf16 %v1284, %v1283
          %v1298 = vpack.c.bf16 %v1286, %v1285
          %v1299 = vpack.c.bf16 %v1288, %v1287
          %v1300 = vpack.c.bf16 %v1290, %v1289
          %v1301 = vpack.c.bf16 %v1292, %v1291
          %v1302 = vpack.c.bf16 %v1294, %v1293
          %v1311 = vunpack.c.l.b16 %v1295
          %v1312 = vunpack.c.h.b16 %v1295
          %v1313 = vunpack.c.l.b16 %v1296
          %v1314 = vunpack.c.h.b16 %v1296
          %v1315 = vunpack.c.l.b16 %v1297
          %v1316 = vunpack.c.h.b16 %v1297
          %v1317 = vunpack.c.l.b16 %v1298
          %v1318 = vunpack.c.h.b16 %v1298
          %v1319 = vunpack.c.l.b16 %v1299
          %v1320 = vunpack.c.h.b16 %v1299
          %v1321 = vunpack.c.l.b16 %v1300
          %v1322 = vunpack.c.h.b16 %v1300
          %v1323 = vunpack.c.l.b16 %v1301
          %v1324 = vunpack.c.h.b16 %v1301
          %v1325 = vunpack.c.l.b16 %v1302
          %v1326 = vunpack.c.h.b16 %v1302
          %v1327 = vpack.c.b16 %v1311, %v1311
          %v1328 = vpack.c.b16 %v1312, %v1312
          %v1329 = vpack.c.b16 %v1313, %v1313
          %v1330 = vpack.c.b16 %v1314, %v1314
          %v1331 = vpack.c.b16 %v1315, %v1315
          %v1332 = vpack.c.b16 %v1316, %v1316
          %v1333 = vpack.c.b16 %v1317, %v1317
          %v1334 = vpack.c.b16 %v1318, %v1318
          %v1335 = vpack.c.b16 %v1319, %v1319
          %v1336 = vpack.c.b16 %v1320, %v1320
          %v1337 = vpack.c.b16 %v1321, %v1321
          %v1338 = vpack.c.b16 %v1322, %v1322
          %v1339 = vpack.c.b16 %v1323, %v1323
          %v1340 = vpack.c.b16 %v1324, %v1324
          %v1341 = vpack.c.b16 %v1325, %v1325
          %v1342 = vpack.c.b16 %v1326, %v1326
          %1359 = vst [vmem:[#allocation3 + $0x4] sm:$0xf] %v1327
          %1360 = vst [vmem:[#allocation3 + $0xc] sm:$0xf] %v1328
          %1361 = vst [vmem:[#allocation3 + $0x14] sm:$0xf] %v1329
          %1362 = vst [vmem:[#allocation3 + $0x1c] sm:$0xf] %v1330
          %1363 = vst [vmem:[#allocation3 + $0x24] sm:$0xf] %v1331
          %1364 = vst [vmem:[#allocation3 + $0x2c] sm:$0xf] %v1332
          %1365 = vst [vmem:[#allocation3 + $0x34] sm:$0xf] %v1333
          %1366 = vst [vmem:[#allocation3 + $0x3c] sm:$0xf] %v1334
          %1367 = vst [vmem:[#allocation3 + $0x44] sm:$0xf] %v1335
          %1368 = vst [vmem:[#allocation3 + $0x4c] sm:$0xf] %v1336
          %1369 = vst [vmem:[#allocation3 + $0x54] sm:$0xf] %v1337
          %1370 = vst [vmem:[#allocation3 + $0x5c] sm:$0xf] %v1338
          %1371 = vst [vmem:[#allocation3 + $0x64] sm:$0xf] %v1339
          %1372 = vst [vmem:[#allocation3 + $0x6c] sm:$0xf] %v1340
          %1373 = vst [vmem:[#allocation3 + $0x74] sm:$0xf] %v1341
          %1374 = vst [vmem:[#allocation3 + $0x7c] sm:$0xf] %v1342
          %v1375 = vld [vmem:[#allocation3] sm:$0xff]
          %v1376 = vld [vmem:[#allocation3 + $0x8] sm:$0xff]
          %v1377 = vld [vmem:[#allocation3 + $0x10] sm:$0xff]
          %v1378 = vld [vmem:[#allocation3 + $0x18] sm:$0xff]
          %v1379 = vld [vmem:[#allocation3 + $0x20] sm:$0xff]
          %v1380 = vld [vmem:[#allocation3 + $0x28] sm:$0xff]
          %v1381 = vld [vmem:[#allocation3 + $0x30] sm:$0xff]
          %v1382 = vld [vmem:[#allocation3 + $0x38] sm:$0xff]
          %v1383 = vld [vmem:[#allocation3 + $0x40] sm:$0xff]
          %v1384 = vld [vmem:[#allocation3 + $0x48] sm:$0xff]
          %v1385 = vld [vmem:[#allocation3 + $0x50] sm:$0xff]
          %v1386 = vld [vmem:[#allocation3 + $0x58] sm:$0xff]
          %v1387 = vld [vmem:[#allocation3 + $0x60] sm:$0xff]
          %v1388 = vld [vmem:[#allocation3 + $0x68] sm:$0xff]
          %v1389 = vld [vmem:[#allocation3 + $0x70] sm:$0xff]
          %v1390 = vld [vmem:[#allocation3 + $0x78] sm:$0xff]
          %v1391 = vld [vmem:[#allocation9] sm:$0xf]
          %v1392 = vld [vmem:[#allocation9 + $0x4] sm:$0xf]
          %v1393 = vld [vmem:[#allocation9 + $0x8] sm:$0xf]
          %v1394 = vld [vmem:[#allocation9 + $0xc] sm:$0xf]
          %v1395 = vld [vmem:[#allocation9 + $0x10] sm:$0xf]
          %v1396 = vld [vmem:[#allocation9 + $0x14] sm:$0xf]
          %v1397 = vld [vmem:[#allocation9 + $0x18] sm:$0xf]
          %v1398 = vld [vmem:[#allocation9 + $0x1c] sm:$0xf]
          %v1399 = vld [vmem:[#allocation9 + $0x20] sm:$0xf]
          %v1400 = vld [vmem:[#allocation9 + $0x24] sm:$0xf]
          %v1401 = vld [vmem:[#allocation9 + $0x28] sm:$0xf]
          %v1402 = vld [vmem:[#allocation9 + $0x2c] sm:$0xf]
          %v1403 = vld [vmem:[#allocation9 + $0x30] sm:$0xf]
          %v1404 = vld [vmem:[#allocation9 + $0x34] sm:$0xf]
          %v1405 = vld [vmem:[#allocation9 + $0x38] sm:$0xf]
          %v1406 = vld [vmem:[#allocation9 + $0x3c] sm:$0xf]
          %v1407 = vld [vmem:[#allocation9 + $0x40] sm:$0xf]
          %v1408 = vld [vmem:[#allocation9 + $0x44] sm:$0xf]
          %v1409 = vld [vmem:[#allocation9 + $0x48] sm:$0xf]
          %v1410 = vld [vmem:[#allocation9 + $0x4c] sm:$0xf]
          %v1411 = vld [vmem:[#allocation9 + $0x50] sm:$0xf]
          %v1412 = vld [vmem:[#allocation9 + $0x54] sm:$0xf]
          %v1413 = vld [vmem:[#allocation9 + $0x58] sm:$0xf]
          %v1414 = vld [vmem:[#allocation9 + $0x5c] sm:$0xf]
          %v1415 = vld [vmem:[#allocation9 + $0x60] sm:$0xf]
          %v1416 = vld [vmem:[#allocation9 + $0x64] sm:$0xf]
          %v1417 = vld [vmem:[#allocation9 + $0x68] sm:$0xf]
          %v1418 = vld [vmem:[#allocation9 + $0x6c] sm:$0xf]
          %v1419 = vld [vmem:[#allocation9 + $0x70] sm:$0xf]
          %v1420 = vld [vmem:[#allocation9 + $0x74] sm:$0xf]
          %v1421 = vld [vmem:[#allocation9 + $0x78] sm:$0xf]
          %v1422 = vld [vmem:[#allocation9 + $0x7c] sm:$0xf]
          %v1423 = vld [vmem:[%s5] sm:$0x1]
          %v1425 = vlaneseq
          %v1426 = vshrl.u32 %v1425, 7
          %v1427 = vsub.s32 0, %v1426
          %v1428 = vrot.slane %v1423, %v1427
          %v1446 = vunpack.c.l.b16 %v1375
          %v1447 = vunpack.c.h.b16 %v1375
          %v1448 = vunpack.c.l.b16 %v1376
          %v1449 = vunpack.c.h.b16 %v1376
          %v1450 = vunpack.c.l.b16 %v1377
          %v1451 = vunpack.c.h.b16 %v1377
          %v1452 = vunpack.c.l.b16 %v1378
          %v1453 = vunpack.c.h.b16 %v1378
          %v1454 = vunpack.c.l.b16 %v1379
          %v1455 = vunpack.c.h.b16 %v1379
          %v1456 = vunpack.c.l.b16 %v1380
          %v1457 = vunpack.c.h.b16 %v1380
          %v1458 = vunpack.c.l.b16 %v1381
          %v1459 = vunpack.c.h.b16 %v1381
          %v1460 = vunpack.c.l.b16 %v1382
          %v1461 = vunpack.c.h.b16 %v1382
          %v1462 = vunpack.c.l.b16 %v1383
          %v1463 = vunpack.c.h.b16 %v1383
          %v1464 = vunpack.c.l.b16 %v1384
          %v1465 = vunpack.c.h.b16 %v1384
          %v1466 = vunpack.c.l.b16 %v1385
          %v1467 = vunpack.c.h.b16 %v1385
          %v1468 = vunpack.c.l.b16 %v1386
          %v1469 = vunpack.c.h.b16 %v1386
          %v1470 = vunpack.c.l.b16 %v1387
          %v1471 = vunpack.c.h.b16 %v1387
          %v1472 = vunpack.c.l.b16 %v1388
          %v1473 = vunpack.c.h.b16 %v1388
          %v1474 = vunpack.c.l.b16 %v1389
          %v1475 = vunpack.c.h.b16 %v1389
          %v1476 = vunpack.c.l.b16 %v1390
          %v1477 = vunpack.c.h.b16 %v1390
          %v1478 = vpack.c.b16 %v1448, %v1446
          %v1479 = vpack.c.b16 %v1449, %v1447
          %v1480 = vpack.c.b16 %v1452, %v1450
          %v1481 = vpack.c.b16 %v1453, %v1451
          %v1482 = vpack.c.b16 %v1456, %v1454
          %v1483 = vpack.c.b16 %v1457, %v1455
          %v1484 = vpack.c.b16 %v1460, %v1458
          %v1485 = vpack.c.b16 %v1461, %v1459
          %v1486 = vpack.c.b16 %v1464, %v1462
          %v1487 = vpack.c.b16 %v1465, %v1463
          %v1488 = vpack.c.b16 %v1468, %v1466
          %v1489 = vpack.c.b16 %v1469, %v1467
          %v1490 = vpack.c.b16 %v1472, %v1470
          %v1491 = vpack.c.b16 %v1473, %v1471
          %v1492 = vpack.c.b16 %v1476, %v1474
          %v1493 = vpack.c.b16 %v1477, %v1475
          %v1542 = vunpack.c.l.b16 %v1391
          %v1543 = vunpack.c.l.b16 %v1392
          %v1544 = vunpack.c.l.b16 %v1393
          %v1545 = vunpack.c.l.b16 %v1394
          %v1546 = vunpack.c.l.b16 %v1395
          %v1547 = vunpack.c.l.b16 %v1396
          %v1548 = vunpack.c.l.b16 %v1397
          %v1549 = vunpack.c.l.b16 %v1398
          %v1550 = vunpack.c.l.b16 %v1399
          %v1551 = vunpack.c.l.b16 %v1400
          %v1552 = vunpack.c.l.b16 %v1401
          %v1553 = vunpack.c.l.b16 %v1402
          %v1554 = vunpack.c.l.b16 %v1403
          %v1555 = vunpack.c.l.b16 %v1404
          %v1556 = vunpack.c.l.b16 %v1405
          %v1557 = vunpack.c.l.b16 %v1406
          %v1558 = vunpack.c.l.b16 %v1407
          %v1559 = vunpack.c.l.b16 %v1408
          %v1560 = vunpack.c.l.b16 %v1409
          %v1561 = vunpack.c.l.b16 %v1410
          %v1562 = vunpack.c.l.b16 %v1411
          %v1563 = vunpack.c.l.b16 %v1412
          %v1564 = vunpack.c.l.b16 %v1413
          %v1565 = vunpack.c.l.b16 %v1414
          %v1566 = vunpack.c.l.b16 %v1415
          %v1567 = vunpack.c.l.b16 %v1416
          %v1568 = vunpack.c.l.b16 %v1417
          %v1569 = vunpack.c.l.b16 %v1418
          %v1570 = vunpack.c.l.b16 %v1419
          %v1571 = vunpack.c.l.b16 %v1420
          %v1572 = vunpack.c.l.b16 %v1421
          %v1573 = vunpack.c.l.b16 %v1422
          %v1574 = vpack.c.b16 %v1543, %v1542
          %v1575 = vpack.c.b16 %v1545, %v1544
          %v1576 = vpack.c.b16 %v1547, %v1546
          %v1577 = vpack.c.b16 %v1549, %v1548
          %v1578 = vpack.c.b16 %v1551, %v1550
          %v1579 = vpack.c.b16 %v1553, %v1552
          %v1580 = vpack.c.b16 %v1555, %v1554
          %v1581 = vpack.c.b16 %v1557, %v1556
          %v1582 = vpack.c.b16 %v1559, %v1558
          %v1583 = vpack.c.b16 %v1561, %v1560
          %v1584 = vpack.c.b16 %v1563, %v1562
          %v1585 = vpack.c.b16 %v1565, %v1564
          %v1586 = vpack.c.b16 %v1567, %v1566
          %v1587 = vpack.c.b16 %v1569, %v1568
          %v1588 = vpack.c.b16 %v1571, %v1570
          %v1589 = vpack.c.b16 %v1573, %v1572
          %1606 = vmatprep.subr.bf16.mxu0 0
          %1607 = vmatpush1.bf16.msra.mxu0 %v1581
          %1608 = vmatprep.subr.bf16.mxu0 0
          %1609 = vmatpush1.bf16.msra.mxu0 %v1580
          %1610 = vmatprep.subr.bf16.mxu0 0
          %1611 = vmatpush1.bf16.msra.mxu0 %v1579
          %1612 = vmatprep.subr.bf16.mxu0 0
          %1613 = vmatpush1.bf16.msra.mxu0 %v1578
          %1614 = vmatprep.subr.bf16.mxu0 0
          %1615 = vmatpush1.bf16.msra.mxu0 %v1577
          %1616 = vmatprep.subr.bf16.mxu0 0
          %1617 = vmatpush1.bf16.msra.mxu0 %v1576
          %1618 = vmatprep.subr.bf16.mxu0 0
          %1619 = vmatpush1.bf16.msra.mxu0 %v1575
          %1620 = vmatprep.subr.bf16.mxu0 0
          %1621 = vmatpush1.bf16.msra.mxu0 %v1574
          %1622 = vmatprep.subr.bf16.mxu0 0
          %1623 = vmatpush2.bf16.msra.mxu0 %v1589
          %1624 = vmatprep.subr.bf16.mxu0 0
          %1625 = vmatpush2.bf16.msra.mxu0 %v1588
          %1626 = vmatprep.subr.bf16.mxu0 0
          %1627 = vmatpush2.bf16.msra.mxu0 %v1587
          %1628 = vmatprep.subr.bf16.mxu0 0
          %1629 = vmatpush2.bf16.msra.mxu0 %v1586
          %1630 = vmatprep.subr.bf16.mxu0 0
          %1631 = vmatpush2.bf16.msra.mxu0 %v1585
          %1632 = vmatprep.subr.bf16.mxu0 0
          %1633 = vmatpush2.bf16.msra.mxu0 %v1584
          %1634 = vmatprep.subr.bf16.mxu0 0
          %1635 = vmatpush2.bf16.msra.mxu0 %v1583
          %1636 = vmatprep.subr.bf16.mxu0 0
          %1637 = vmatpush2.bf16.msra.mxu0 %v1582
          %1638 = vmatprep.mubr.bf16.mxu0 %v1479
          %1639 = vmatmul.mubr.bf16.gmra.mxu0 %v1478
          %v1640 = vpop.f32.mrf.mxu0
          %v1641 = vadd.f32 %v1428, %v1640
          %v1642 = vpop.f32.mrf.mxu0
          %v1643 = vpop.f32.mrf.mxu0
          %v1644 = vadd.f32 %v1428, %v1643
          %v1645 = vpop.f32.mrf.mxu0
          %1646 = vmatprep.mubr.bf16.mxu0 %v1481
          %1647 = vmatmul.mubr.bf16.gmra.mxu0 %v1480
          %v1648 = vpop.f32.mrf.mxu0
          %v1649 = vadd.f32 %v1428, %v1648
          %v1650 = vpop.f32.mrf.mxu0
          %v1651 = vpop.f32.mrf.mxu0
          %v1652 = vadd.f32 %v1428, %v1651
          %v1653 = vpop.f32.mrf.mxu0
          %1654 = vmatprep.mubr.bf16.mxu0 %v1483
          %1655 = vmatmul.mubr.bf16.gmra.mxu0 %v1482
          %v1656 = vpop.f32.mrf.mxu0
          %v1657 = vadd.f32 %v1428, %v1656
          %v1658 = vpop.f32.mrf.mxu0
          %v1659 = vpop.f32.mrf.mxu0
          %v1660 = vadd.f32 %v1428, %v1659
          %v1661 = vpop.f32.mrf.mxu0
          %1662 = vmatprep.mubr.bf16.mxu0 %v1485
          %1663 = vmatmul.mubr.bf16.gmra.mxu0 %v1484
          %v1664 = vpop.f32.mrf.mxu0
          %v1665 = vadd.f32 %v1428, %v1664
          %v1666 = vpop.f32.mrf.mxu0
          %v1667 = vpop.f32.mrf.mxu0
          %v1668 = vadd.f32 %v1428, %v1667
          %v1669 = vpop.f32.mrf.mxu0
          %1670 = vmatprep.mubr.bf16.mxu0 %v1487
          %1671 = vmatmul.mubr.bf16.gmra.mxu0 %v1486
          %v1672 = vpop.f32.mrf.mxu0
          %v1673 = vadd.f32 %v1428, %v1672
          %v1674 = vpop.f32.mrf.mxu0
          %v1675 = vpop.f32.mrf.mxu0
          %v1676 = vadd.f32 %v1428, %v1675
          %v1677 = vpop.f32.mrf.mxu0
          %1678 = vmatprep.mubr.bf16.mxu0 %v1489
          %1679 = vmatmul.mubr.bf16.gmra.mxu0 %v1488
          %v1680 = vpop.f32.mrf.mxu0
          %v1681 = vadd.f32 %v1428, %v1680
          %v1682 = vpop.f32.mrf.mxu0
          %v1683 = vpop.f32.mrf.mxu0
          %v1684 = vadd.f32 %v1428, %v1683
          %v1685 = vpop.f32.mrf.mxu0
          %1686 = vmatprep.mubr.bf16.mxu0 %v1491
          %1687 = vmatmul.mubr.bf16.gmra.mxu0 %v1490
          %v1688 = vpop.f32.mrf.mxu0
          %v1689 = vadd.f32 %v1428, %v1688
          %v1690 = vpop.f32.mrf.mxu0
          %v1691 = vpop.f32.mrf.mxu0
          %v1692 = vadd.f32 %v1428, %v1691
          %v1693 = vpop.f32.mrf.mxu0
          %1694 = vmatprep.mubr.bf16.mxu0 %v1493
          %1695 = vmatmul.mubr.bf16.gmra.mxu0 %v1492
          %v1696 = vpop.f32.mrf.mxu0
          %v1697 = vadd.f32 %v1428, %v1696
          %v1698 = vpop.f32.mrf.mxu0
          %v1699 = vpop.f32.mrf.mxu0
          %v1700 = vadd.f32 %v1428, %v1699
          %v1701 = vpop.f32.mrf.mxu0
          %1702 = vdwg.mxu0
          %v1703 = vmax.f32 %v1641, 0.0
          %v1704 = vmax.f32 %v1644, 0.0
          %v1705 = vmax.f32 %v1649, 0.0
          %v1706 = vmax.f32 %v1652, 0.0
          %v1707 = vmax.f32 %v1657, 0.0
          %v1708 = vmax.f32 %v1660, 0.0
          %v1709 = vmax.f32 %v1665, 0.0
          %v1710 = vmax.f32 %v1668, 0.0
          %v1711 = vmax.f32 %v1673, 0.0
          %v1712 = vmax.f32 %v1676, 0.0
          %v1713 = vmax.f32 %v1681, 0.0
          %v1714 = vmax.f32 %v1684, 0.0
          %v1715 = vmax.f32 %v1689, 0.0
          %v1716 = vmax.f32 %v1692, 0.0
          %v1717 = vmax.f32 %v1697, 0.0
          %v1718 = vmax.f32 %v1700, 0.0
          %v1719 = vpack.c.bf16 %v1704, %v1703
          %v1720 = vpack.c.bf16 %v1706, %v1705
          %v1721 = vpack.c.bf16 %v1708, %v1707
          %v1722 = vpack.c.bf16 %v1710, %v1709
          %v1723 = vpack.c.bf16 %v1712, %v1711
          %v1724 = vpack.c.bf16 %v1714, %v1713
          %v1725 = vpack.c.bf16 %v1716, %v1715
          %v1726 = vpack.c.bf16 %v1718, %v1717
          %v1735 = vunpack.c.l.b16 %v1719
          %v1736 = vunpack.c.h.b16 %v1719
          %v1737 = vunpack.c.l.b16 %v1720
          %v1738 = vunpack.c.h.b16 %v1720
          %v1739 = vunpack.c.l.b16 %v1721
          %v1740 = vunpack.c.h.b16 %v1721
          %v1741 = vunpack.c.l.b16 %v1722
          %v1742 = vunpack.c.h.b16 %v1722
          %v1743 = vunpack.c.l.b16 %v1723
          %v1744 = vunpack.c.h.b16 %v1723
          %v1745 = vunpack.c.l.b16 %v1724
          %v1746 = vunpack.c.h.b16 %v1724
          %v1747 = vunpack.c.l.b16 %v1725
          %v1748 = vunpack.c.h.b16 %v1725
          %v1749 = vunpack.c.l.b16 %v1726
          %v1750 = vunpack.c.h.b16 %v1726
          %v1751 = vpack.c.b16 %v1735, %v1735
          %v1752 = vpack.c.b16 %v1736, %v1736
          %v1753 = vpack.c.b16 %v1737, %v1737
          %v1754 = vpack.c.b16 %v1738, %v1738
          %v1755 = vpack.c.b16 %v1739, %v1739
          %v1756 = vpack.c.b16 %v1740, %v1740
          %v1757 = vpack.c.b16 %v1741, %v1741
          %v1758 = vpack.c.b16 %v1742, %v1742
          %v1759 = vpack.c.b16 %v1743, %v1743
          %v1760 = vpack.c.b16 %v1744, %v1744
          %v1761 = vpack.c.b16 %v1745, %v1745
          %v1762 = vpack.c.b16 %v1746, %v1746
          %v1763 = vpack.c.b16 %v1747, %v1747
          %v1764 = vpack.c.b16 %v1748, %v1748
          %v1765 = vpack.c.b16 %v1749, %v1749
          %v1766 = vpack.c.b16 %v1750, %v1750
          %1783 = vst [vmem:[%s372] sm:$0xf] %v1751
          %1784 = vst [vmem:[%s372 + $0x4] sm:$0xf] %v1752
          %1785 = vst [vmem:[%s372 + $0x8] sm:$0xf] %v1753
          %1786 = vst [vmem:[%s372 + $0xc] sm:$0xf] %v1754
          %1787 = vst [vmem:[%s372 + $0x10] sm:$0xf] %v1755
          %1788 = vst [vmem:[%s372 + $0x14] sm:$0xf] %v1756
          %1789 = vst [vmem:[%s372 + $0x18] sm:$0xf] %v1757
          %1790 = vst [vmem:[%s372 + $0x1c] sm:$0xf] %v1758
          %1791 = vst [vmem:[%s372 + $0x20] sm:$0xf] %v1759
          %1792 = vst [vmem:[%s372 + $0x24] sm:$0xf] %v1760
          %1793 = vst [vmem:[%s372 + $0x28] sm:$0xf] %v1761
          %1794 = vst [vmem:[%s372 + $0x2c] sm:$0xf] %v1762
          %1795 = vst [vmem:[%s372 + $0x30] sm:$0xf] %v1763
          %1796 = vst [vmem:[%s372 + $0x34] sm:$0xf] %v1764
          %1797 = vst [vmem:[%s372 + $0x38] sm:$0xf] %v1765
          %1798 = vst [vmem:[%s372 + $0x3c] sm:$0xf] %v1766
        $region64: #{tpu_custom_call.1} parent=43 // pred_fallthru
          _
        %s1799 = sand.u32 %s194, 1
        %s1800 = scalar_lea.sflag [#allocation6], %s1799
        %s1801 = sand.u32 %s194, 1
        %s1802 = smul.addr %s1801, 64
        %s1803 = scalar_lea.vmem [#allocation10], %s1802
        // Predicated region
        $region65: #{tpu_custom_call.1} parent=43 // pred_check
          %p1804 = pneg %p204
        $region66: #{tpu_custom_call.1} parent=43 // pred_check_branch
          %1806 = sbr.rel (%p1804) target = $region68
        $region67: #{tpu_custom_call.1} parent=43 // pred_region
          %s1807 = smul.u32 16, %s30
          %s1809 = ssub.s32 1024, 1024
          %1810 = vsyncadd %s1800, %s1809
          %s1811 = smul.addr %s1807, 64
          %s1812 = scalar_lea.hbm %s6, %s1811
          %s1813 = sshll.u32 %s1803, 4
          %s1814 = int_to_ptr.vmem [resolvable:$true] %s1813
          %1819 = dma.vmem_to_hbm [thread:$0]  %s1814, 1024, %s1812, %s1800, 64, 64, 4
        $region68: #{tpu_custom_call.1} parent=43 // pred_fallthru
          _
      $region44: #{tpu_custom_call.1} parent=5 // pred_fallthru
        _
      %p1820 = scmp.le.s32.totalorder 2, %s21
      // Predicated region
      $region69: #{tpu_custom_call.1} parent=5 // pred_check
        %p1821 = pneg %p1820
      $region70: #{tpu_custom_call.1} parent=5 // pred_check_branch
        %1823 = sbr.rel (%p1821) target = $region72
      $region71: #{tpu_custom_call.1} parent=5 // pred_region
        %s1824 = ssub.s32 %s21, 2
        // Predicated region
        $region73: #{tpu_custom_call.1} parent=71 // pred_check
          %p1825 = pneg %p210
        $region74: #{tpu_custom_call.1} parent=71 // pred_check_branch
          %1827 = sbr.rel (%p1825) target = $region76
        $region75: #{tpu_custom_call.1} parent=71 // pred_region
          %s1828 = sand.u32 %s195, 1
          %s1829 = scalar_lea.sflag [#allocation6], %s1828
          %s1830 = sand.u32 %s195, 1
          %s1831 = smul.addr %s1830, 64
          %s1832 = scalar_lea.vmem [#allocation10], %s1831
          %1833 = dma.done %s1829, 1024
        $region76: #{tpu_custom_call.1} parent=71 // pred_fallthru
          _
      $region72: #{tpu_custom_call.1} parent=5 // pred_fallthru
        _
    $region6: #{tpu_custom_call.1} parent=1 // loop_footer
      %s25 = sadd.s32 1, %s21
    $region7: #{tpu_custom_call.1} parent=1 // loop_footer_branch
      %20 = sbr.rel target = $region3
    $region8: #{tpu_custom_call.1} parent=1 // loop_exit
      _
    %1834 = vsyncpa [#allocation5], 1
    %s1835 = scalar_lea.sflag [#allocation5], 1
    %1836 = vsyncpa %s1835, 1
    %1837 = vsyncpa [#allocation8], 1
    %s1838 = scalar_lea.sflag [#allocation8], 1
    %1839 = vsyncpa %s1838, 1
    %1840 = vsyncpa [#allocation6], 1
    %s1841 = scalar_lea.sflag [#allocation6], 1
    %1842 = vsyncpa %s1841, 1

</llo_original>
